<compile_context>
chip_gen: v6e
topology: v6e:2x2x1
jax: 0.10.0
libtpu: 0.0.40
codegen_flags: <defaults>
</compile_context>

<pallas_src>
import functools

import jax
import jax.numpy as jnp
from jax.experimental import pallas as pl
from jax.experimental.pallas import tpu as pltpu


def _transformer_layer_kernel(
    x_ref,        # (R, C)   R = Nb * L rows of the current batch block
    wqkv_ref,     # (C, 3C)  fused (outer linear @ MHA in_proj), scale folded into q part
    bqkv_ref,     # (1, 3C)  fused in_proj biases (q bias pre-scaled)
    wo_ref,       # (C, C)   MHA out_proj weight (pre-transposed: y = a @ W)
    bo_ref,       # (1, C)   MHA out_proj bias
    wffn_ref,     # (C, C)   fused fc1 @ fc2 (pre-transposed)
    o_ref,        # (R, C)   output block
    mha_ref,      # (R, C)   f32 VMEM scratch: attention output before bias/residual
    *, num_heads, seq_len, nb,
):
    f32 = jnp.float32
    x = x_ref[...].astype(f32)                       # (R, C)
    C = x.shape[-1]
    D = C // num_heads

    # Single wide QKV projection over all Nb*L rows (q part already scaled by 1/sqrt(D)).
    qkv = jnp.dot(x, wqkv_ref[...], preferred_element_type=f32) + bqkv_ref[...]
    q = qkv[:, :C]
    k = qkv[:, C:2 * C]
    v = qkv[:, 2 * C:]

    wo = wo_ref[...]                                 # hoisted: read once

    # Per-batch-element, per-head attention; out_proj accumulated per head
    # (no concatenate of narrow head slices).
    for b in range(nb):
        r0 = b * seq_len
        acc = jnp.zeros((seq_len, C), f32)
        for h in range(num_heads):
            c0 = h * D
            qh = q[r0:r0 + seq_len, c0:c0 + D]       # (L, D)
            kh = k[r0:r0 + seq_len, c0:c0 + D]
            vh = v[r0:r0 + seq_len, c0:c0 + D]
            s = jnp.dot(qh, kh.T, preferred_element_type=f32)          # (L, L), pre-scaled
            s = s - jnp.max(s, axis=-1, keepdims=True)
            p = jnp.exp(s)
            p = p * pl.reciprocal(jnp.sum(p, axis=-1, keepdims=True), approx=True)
            oh = jnp.dot(p, vh, preferred_element_type=f32)            # (L, D)
            acc = acc + jnp.dot(oh, wo[c0:c0 + D, :],
                                preferred_element_type=f32)            # (L, C)
        mha_ref[r0:r0 + seq_len, :] = acc

    # out_proj bias + residual, then fused FFN on the full (R, C) slab + residual.
    x1 = mha_ref[...] + bo_ref[...] + x
    y = jnp.dot(x1, wffn_ref[...], preferred_element_type=f32) + x1
    o_ref[...] = y.astype(o_ref.dtype)


def _pick_batch_block(n):
    """Batch elements per grid step.  v7x has 2 TensorCores -> keep 2 parallel steps;
    single-TC chips (v5e/v6e) -> collapse the grid (one step, max MXU row fill)."""
    try:
        kind = jax.devices()[0].device_kind.lower()
    except Exception:
        kind = ""
    if ("v7" in kind) and n >= 2 and n % 2 == 0:
        return n // 2
    return n


def init_params(key, c):
    """Deterministic synthetic parameters.  All Linear weights are stored in
    PyTorch convention (out_features, in_features); y = x @ W^T."""
    ks = jax.random.split(key, 10)
    s = 0.05
    p = {
        "wq":  jax.random.normal(ks[0], (c, c), jnp.float32) * s,
        "wk":  jax.random.normal(ks[1], (c, c), jnp.float32) * s,
        "wv":  jax.random.normal(ks[2], (c, c), jnp.float32) * s,
        # MultiheadAttention in_proj_weight is (3c, c); split into q/k/v parts.
        "wqi": jax.random.normal(ks[3], (c, c), jnp.float32) * s,
        "wki": jax.random.normal(ks[4], (c, c), jnp.float32) * s,
        "wvi": jax.random.normal(ks[5], (c, c), jnp.float32) * s,
        "bqi": jax.random.normal(ks[6], (c,), jnp.float32) * s,
        "bki": jax.random.normal(ks[7], (c,), jnp.float32) * s,
        "bvi": jax.random.normal(ks[8], (c,), jnp.float32) * s,
        "wo":  jax.random.normal(ks[9], (c, c), jnp.float32) * s,
        "bo":  jnp.linspace(-0.1, 0.1, c).astype(jnp.float32),
        "w1":  jax.random.normal(jax.random.fold_in(key, 101), (c, c), jnp.float32) * s,
        "w2":  jax.random.normal(jax.random.fold_in(key, 102), (c, c), jnp.float32) * s,
    }
    return p


def transformer_layer(x_lnc, params, num_heads, batch_block=None):
    """x_lnc: (L, N, C) float32, matching the PyTorch module's convention."""
    L, N, C = x_lnc.shape
    assert C % num_heads == 0
    D = C // num_heads
    scale = 1.0 / (D ** 0.5)

    if batch_block is None:
        batch_block = _pick_batch_block(N)
    assert N % batch_block == 0
    G = N // batch_block          # grid steps
    R = batch_block * L           # rows per step

    f32 = jnp.float32
    x_nlc = jnp.transpose(x_lnc, (1, 0, 2))          # (N, L, C) batch-major
    x_blk = x_nlc.reshape(G, R, C)                   # (G, Nb*L, C)

    # ---- algebraic weight fusion (wrapper-side, done once) --------------------
    # PyTorch Linear: y = x @ W^T.  No nonlinearity between the outer q/k/v
    # Linear and the MHA in_proj, so fuse:  q = x @ (Wq^T @ Wqi^T) + bqi.
    wq_t = params["wq"].T.astype(f32) @ params["wqi"].T.astype(f32)
    wk_t = params["wk"].T.astype(f32) @ params["wki"].T.astype(f32)
    wv_t = params["wv"].T.astype(f32) @ params["wvi"].T.astype(f32)
    # Fold the 1/sqrt(head_dim) attention scale into the q projection + bias.
    w_qkv = jnp.concatenate([wq_t * scale, wk_t, wv_t], axis=1)            # (C, 3C)
    b_qkv = jnp.concatenate(
        [params["bqi"].astype(f32) * scale,
         params["bki"].astype(f32),
         params["bvi"].astype(f32)]).reshape(1, 3 * C)                      # (1, 3C)
    wo_t = params["wo"].T.astype(f32)                                       # (C, C)
    bo = params["bo"].reshape(1, C).astype(f32)                             # (1, C)
    # FFN has no activation: fc2(fc1(x)) = x @ (W1^T @ W2^T).
    w_ffn = params["w1"].T.astype(f32) @ params["w2"].T.astype(f32)         # (C, C)

    kernel = functools.partial(
        _transformer_layer_kernel, num_heads=num_heads, seq_len=L, nb=batch_block)

    x_spec = pl.BlockSpec((None, R, C), lambda g: (g, 0, 0))
    # Grid-invariant weights (index_map constant).
    # TODO(synk): for production-sized C, single-buffer these (pipeline_mode=pl.Buffered(1))
    # and/or cast resident weights to bf16 to fit v7x's 64 MiB VMEM; irrelevant at C=32.
    w_qkv_spec = pl.BlockSpec((C, 3 * C), lambda g: (0, 0))
    b_qkv_spec = pl.BlockSpec((1, 3 * C), lambda g: (0, 0))
    mat_spec = pl.BlockSpec((C, C), lambda g: (0, 0))
    bias_spec = pl.BlockSpec((1, C), lambda g: (0, 0))

    out_blk = pl.pallas_call(
        kernel,
        out_shape=jax.ShapeDtypeStruct((G, R, C), x_lnc.dtype),
        grid_spec=pltpu.PrefetchScalarGridSpec(
            num_scalar_prefetch=0,
            grid=(G,),
            in_specs=[x_spec, w_qkv_spec, b_qkv_spec, mat_spec, bias_spec, mat_spec],
            out_specs=pl.BlockSpec((None, R, C), lambda g: (g, 0, 0)),
            scratch_shapes=[pltpu.VMEM((R, C), jnp.float32)],
        ),
        compiler_params=pltpu.CompilerParams(
            dimension_semantics=("parallel",),
        ),
    )(x_blk, w_qkv, b_qkv, wo_t, bo, w_ffn)

    out_nlc = out_blk.reshape(N, L, C)
    return jnp.transpose(out_nlc, (1, 0, 2))         # back to (L, N, C)


def transformer_layer_ref(x_lnc, params, num_heads):
    """Pure-JAX reference mirroring torch semantics exactly (unfused)."""
    L, N, C = x_lnc.shape
    D = C // num_heads
    x = x_lnc.astype(jnp.float32)

    def lin(y, w, b=None):
        out = jnp.einsum("lnc,oc->lno", y, w)
        return out if b is None else out + b

    q0 = lin(x, params["wq"])
    k0 = lin(x, params["wk"])
    v0 = lin(x, params["wv"])
    q = lin(q0, params["wqi"], params["bqi"])
    k = lin(k0, params["wki"], params["bki"])
    v = lin(v0, params["wvi"], params["bvi"])

    def split_heads(t):                               # (L, N, C) -> (N, H, L, D)
        return jnp.transpose(t.reshape(L, N, num_heads, D), (1, 2, 0, 3))

    qh, kh, vh = split_heads(q), split_heads(k), split_heads(v)
    s = jnp.einsum("nhld,nhmd->nhlm", qh, kh) / (D ** 0.5)
    p = jax.nn.softmax(s, axis=-1)
    a = jnp.einsum("nhlm,nhmd->nhld", p, vh)          # (N, H, L, D)
    a = jnp.transpose(a, (2, 0, 1, 3)).reshape(L, N, C)
    mha = lin(a, params["wo"], params["bo"])
    x1 = mha + x
    x2 = lin(lin(x1, params["w1"]), params["w2"]) + x1
    return x2


if __name__ == "__main__":
    key = jax.random.PRNGKey(0)
    k_x, k_p = jax.random.split(key)

    # Small shapes: seq=8, batch=2, embed=32, heads=4 (head_dim=8).
    L, N, C, H = 8, 2, 32, 4
    x = jax.random.normal(k_x, (L, N, C), jnp.float32)
    params = init_params(k_p, C)

    out = transformer_layer(x, params, num_heads=H)
    out = jax.block_until_ready(out)

    ref = transformer_layer_ref(x, params, num_heads=H)
    assert out.shape == (L, N, C)
    max_err = float(jnp.max(jnp.abs(out - ref)))
    # Tolerance accounts for fp32 weight-fusion rounding + approx EUP reciprocal.
    assert jnp.allclose(out, ref, atol=2e-3, rtol=2e-3), max_err

    print("KERNEL_OK")
</pallas_src>

<mosaic_0001>
module attributes {stable_mosaic.version = 11 : i64} {
  func.func @_transformer_layer_kernel(%arg0: i32, %arg1: memref<1x16x32xf32, #tpu.memory_space<vmem>>, %arg2: memref<32x96xf32, #tpu.memory_space<vmem>>, %arg3: memref<1x96xf32, #tpu.memory_space<vmem>>, %arg4: memref<32x32xf32, #tpu.memory_space<vmem>>, %arg5: memref<1x32xf32, #tpu.memory_space<vmem>>, %arg6: memref<32x32xf32, #tpu.memory_space<vmem>>, %arg7: memref<1x16x32xf32, #tpu.memory_space<vmem>>, %arg8: memref<16x32xf32, #tpu.memory_space<vmem>>) attributes {dimension_semantics = [#tpu.dimension_semantics<parallel>], iteration_bounds = array<i64: 1>, scalar_prefetch = 0 : i64, scratch_operands = 1 : i64, tpu.core_type = #tpu.core_type<tc>, window_params = [{transform_indices = @transform_0, window_bounds = array<i64: 1, 16, 32>}, {pipeline_mode = #tpu.pipeline_mode<synchronous>, transform_indices = @transform_1, window_bounds = array<i64: 32, 96>}, {pipeline_mode = #tpu.pipeline_mode<synchronous>, transform_indices = @transform_2, window_bounds = array<i64: 1, 96>}, {pipeline_mode = #tpu.pipeline_mode<synchronous>, transform_indices = @transform_3, window_bounds = array<i64: 32, 32>}, {pipeline_mode = #tpu.pipeline_mode<synchronous>, transform_indices = @transform_4, window_bounds = array<i64: 1, 32>}, {pipeline_mode = #tpu.pipeline_mode<synchronous>, transform_indices = @transform_5, window_bounds = array<i64: 32, 32>}, {transform_indices = @transform_6, window_bounds = array<i64: 1, 16, 32>}]} {
    %c0 = arith.constant 0 : index
    %c0_0 = arith.constant 0 : index
    %c0_1 = arith.constant 0 : index
    %0 = vector.load %arg1[%c0, %c0_0, %c0_1] : memref<1x16x32xf32, #tpu.memory_space<vmem>>, vector<1x16x32xf32>
    %1 = vector.shape_cast %0 : vector<1x16x32xf32> to vector<16x32xf32>
    %c0_2 = arith.constant 0 : index
    %c0_3 = arith.constant 0 : index
    %2 = vector.load %arg2[%c0_2, %c0_3] : memref<32x96xf32, #tpu.memory_space<vmem>>, vector<32x96xf32>
    %cst = arith.constant dense<0.000000e+00> : vector<16x96xf32>
    %3 = tpu.matmul %1, %2, %cst {dimension_numbers = #tpu.dot_dimension_numbers<[1], [0], [0], [1], [0, 0, 1, 1], [], []>} : vector<16x32xf32>, vector<32x96xf32>, vector<16x96xf32> -> vector<16x96xf32>
    %c0_4 = arith.constant 0 : index
    %c0_5 = arith.constant 0 : index
    %4 = vector.load %arg3[%c0_4, %c0_5] : memref<1x96xf32, #tpu.memory_space<vmem>>, vector<1x96xf32>
    %5 = vector.broadcast %4 : vector<1x96xf32> to vector<16x96xf32>
    %6 = arith.addf %3, %5 : vector<16x96xf32>
    %7 = vector.extract_strided_slice %6 {offsets = [0, 0], sizes = [16, 32], strides = [1, 1]} : vector<16x96xf32> to vector<16x32xf32>
    %8 = vector.extract_strided_slice %6 {offsets = [0, 32], sizes = [16, 32], strides = [1, 1]} : vector<16x96xf32> to vector<16x32xf32>
    %9 = vector.extract_strided_slice %6 {offsets = [0, 64], sizes = [16, 32], strides = [1, 1]} : vector<16x96xf32> to vector<16x32xf32>
    %c0_6 = arith.constant 0 : index
    %c0_7 = arith.constant 0 : index
    %10 = vector.load %arg4[%c0_6, %c0_7] : memref<32x32xf32, #tpu.memory_space<vmem>>, vector<32x32xf32>
    %cst_8 = arith.constant 0.000000e+00 : f32
    %11 = vector.broadcast %cst_8 : f32 to vector<8x32xf32>
    %12 = vector.extract_strided_slice %7 {offsets = [0, 0], sizes = [8, 8], strides = [1, 1]} : vector<16x32xf32> to vector<8x8xf32>
    %13 = vector.extract_strided_slice %8 {offsets = [0, 0], sizes = [8, 8], strides = [1, 1]} : vector<16x32xf32> to vector<8x8xf32>
    %14 = vector.extract_strided_slice %9 {offsets = [0, 0], sizes = [8, 8], strides = [1, 1]} : vector<16x32xf32> to vector<8x8xf32>
    %15 = tpu.transpose %13, [1, 0] : vector<8x8xf32> -> vector<8x8xf32>
    %cst_9 = arith.constant dense<0.000000e+00> : vector<8x8xf32>
    %16 = tpu.matmul %12, %15, %cst_9 {dimension_numbers = #tpu.dot_dimension_numbers<[1], [0], [0], [1], [0, 0, 1, 1], [], []>} : vector<8x8xf32>, vector<8x8xf32>, vector<8x8xf32> -> vector<8x8xf32>
    %cst_10 = arith.constant dense<0xFF800000> : vector<8xf32>
    %17 = vector.multi_reduction <maximumf>, %16, %cst_10 [1] : vector<8x8xf32> to vector<8xf32>
    %18 = vector.shape_cast %17 : vector<8xf32> to vector<8x1xf32>
    %19 = vector.broadcast %18 : vector<8x1xf32> to vector<8x8xf32>
    %20 = arith.subf %16, %19 : vector<8x8xf32>
    %21 = math.exp %20 : vector<8x8xf32>
    %cst_11 = arith.constant dense<0.000000e+00> : vector<8xf32>
    %22 = vector.multi_reduction <add>, %21, %cst_11 [1] : vector<8x8xf32> to vector<8xf32>
    %23 = vector.shape_cast %22 : vector<8xf32> to vector<8x1xf32>
    %24 = tpu.reciprocal %23 {approx = true} : vector<8x1xf32> -> vector<8x1xf32>
    %25 = vector.broadcast %24 : vector<8x1xf32> to vector<8x8xf32>
    %26 = arith.mulf %21, %25 : vector<8x8xf32>
    %cst_12 = arith.constant dense<0.000000e+00> : vector<8x8xf32>
    %27 = tpu.matmul %26, %14, %cst_12 {dimension_numbers = #tpu.dot_dimension_numbers<[1], [0], [0], [1], [0, 0, 1, 1], [], []>} : vector<8x8xf32>, vector<8x8xf32>, vector<8x8xf32> -> vector<8x8xf32>
    %28 = vector.extract_strided_slice %10 {offsets = [0, 0], sizes = [8, 32], strides = [1, 1]} : vector<32x32xf32> to vector<8x32xf32>
    %cst_13 = arith.constant dense<0.000000e+00> : vector<8x32xf32>
    %29 = tpu.matmul %27, %28, %cst_13 {dimension_numbers = #tpu.dot_dimension_numbers<[1], [0], [0], [1], [0, 0, 1, 1], [], []>} : vector<8x8xf32>, vector<8x32xf32>, vector<8x32xf32> -> vector<8x32xf32>
    %30 = arith.addf %11, %29 : vector<8x32xf32>
    %31 = vector.extract_strided_slice %7 {offsets = [0, 8], sizes = [8, 8], strides = [1, 1]} : vector<16x32xf32> to vector<8x8xf32>
    %32 = vector.extract_strided_slice %8 {offsets = [0, 8], sizes = [8, 8], strides = [1, 1]} : vector<16x32xf32> to vector<8x8xf32>
    %33 = vector.extract_strided_slice %9 {offsets = [0, 8], sizes = [8, 8], strides = [1, 1]} : vector<16x32xf32> to vector<8x8xf32>
    %34 = tpu.transpose %32, [1, 0] : vector<8x8xf32> -> vector<8x8xf32>
    %cst_14 = arith.constant dense<0.000000e+00> : vector<8x8xf32>
    %35 = tpu.matmul %31, %34, %cst_14 {dimension_numbers = #tpu.dot_dimension_numbers<[1], [0], [0], [1], [0, 0, 1, 1], [], []>} : vector<8x8xf32>, vector<8x8xf32>, vector<8x8xf32> -> vector<8x8xf32>
    %cst_15 = arith.constant dense<0xFF800000> : vector<8xf32>
    %36 = vector.multi_reduction <maximumf>, %35, %cst_15 [1] : vector<8x8xf32> to vector<8xf32>
    %37 = vector.shape_cast %36 : vector<8xf32> to vector<8x1xf32>
    %38 = vector.broadcast %37 : vector<8x1xf32> to vector<8x8xf32>
    %39 = arith.subf %35, %38 : vector<8x8xf32>
    %40 = math.exp %39 : vector<8x8xf32>
    %cst_16 = arith.constant dense<0.000000e+00> : vector<8xf32>
    %41 = vector.multi_reduction <add>, %40, %cst_16 [1] : vector<8x8xf32> to vector<8xf32>
    %42 = vector.shape_cast %41 : vector<8xf32> to vector<8x1xf32>
    %43 = tpu.reciprocal %42 {approx = true} : vector<8x1xf32> -> vector<8x1xf32>
    %44 = vector.broadcast %43 : vector<8x1xf32> to vector<8x8xf32>
    %45 = arith.mulf %40, %44 : vector<8x8xf32>
    %cst_17 = arith.constant dense<0.000000e+00> : vector<8x8xf32>
    %46 = tpu.matmul %45, %33, %cst_17 {dimension_numbers = #tpu.dot_dimension_numbers<[1], [0], [0], [1], [0, 0, 1, 1], [], []>} : vector<8x8xf32>, vector<8x8xf32>, vector<8x8xf32> -> vector<8x8xf32>
    %47 = vector.extract_strided_slice %10 {offsets = [8, 0], sizes = [8, 32], strides = [1, 1]} : vector<32x32xf32> to vector<8x32xf32>
    %cst_18 = arith.constant dense<0.000000e+00> : vector<8x32xf32>
    %48 = tpu.matmul %46, %47, %cst_18 {dimension_numbers = #tpu.dot_dimension_numbers<[1], [0], [0], [1], [0, 0, 1, 1], [], []>} : vector<8x8xf32>, vector<8x32xf32>, vector<8x32xf32> -> vector<8x32xf32>
    %49 = arith.addf %30, %48 : vector<8x32xf32>
    %50 = vector.extract_strided_slice %7 {offsets = [0, 16], sizes = [8, 8], strides = [1, 1]} : vector<16x32xf32> to vector<8x8xf32>
    %51 = vector.extract_strided_slice %8 {offsets = [0, 16], sizes = [8, 8], strides = [1, 1]} : vector<16x32xf32> to vector<8x8xf32>
    %52 = vector.extract_strided_slice %9 {offsets = [0, 16], sizes = [8, 8], strides = [1, 1]} : vector<16x32xf32> to vector<8x8xf32>
    %53 = tpu.transpose %51, [1, 0] : vector<8x8xf32> -> vector<8x8xf32>
    %cst_19 = arith.constant dense<0.000000e+00> : vector<8x8xf32>
    %54 = tpu.matmul %50, %53, %cst_19 {dimension_numbers = #tpu.dot_dimension_numbers<[1], [0], [0], [1], [0, 0, 1, 1], [], []>} : vector<8x8xf32>, vector<8x8xf32>, vector<8x8xf32> -> vector<8x8xf32>
    %cst_20 = arith.constant dense<0xFF800000> : vector<8xf32>
    %55 = vector.multi_reduction <maximumf>, %54, %cst_20 [1] : vector<8x8xf32> to vector<8xf32>
    %56 = vector.shape_cast %55 : vector<8xf32> to vector<8x1xf32>
    %57 = vector.broadcast %56 : vector<8x1xf32> to vector<8x8xf32>
    %58 = arith.subf %54, %57 : vector<8x8xf32>
    %59 = math.exp %58 : vector<8x8xf32>
    %cst_21 = arith.constant dense<0.000000e+00> : vector<8xf32>
    %60 = vector.multi_reduction <add>, %59, %cst_21 [1] : vector<8x8xf32> to vector<8xf32>
    %61 = vector.shape_cast %60 : vector<8xf32> to vector<8x1xf32>
    %62 = tpu.reciprocal %61 {approx = true} : vector<8x1xf32> -> vector<8x1xf32>
    %63 = vector.broadcast %62 : vector<8x1xf32> to vector<8x8xf32>
    %64 = arith.mulf %59, %63 : vector<8x8xf32>
    %cst_22 = arith.constant dense<0.000000e+00> : vector<8x8xf32>
    %65 = tpu.matmul %64, %52, %cst_22 {dimension_numbers = #tpu.dot_dimension_numbers<[1], [0], [0], [1], [0, 0, 1, 1], [], []>} : vector<8x8xf32>, vector<8x8xf32>, vector<8x8xf32> -> vector<8x8xf32>
    %66 = vector.extract_strided_slice %10 {offsets = [16, 0], sizes = [8, 32], strides = [1, 1]} : vector<32x32xf32> to vector<8x32xf32>
    %cst_23 = arith.constant dense<0.000000e+00> : vector<8x32xf32>
    %67 = tpu.matmul %65, %66, %cst_23 {dimension_numbers = #tpu.dot_dimension_numbers<[1], [0], [0], [1], [0, 0, 1, 1], [], []>} : vector<8x8xf32>, vector<8x32xf32>, vector<8x32xf32> -> vector<8x32xf32>
    %68 = arith.addf %49, %67 : vector<8x32xf32>
    %69 = vector.extract_strided_slice %7 {offsets = [0, 24], sizes = [8, 8], strides = [1, 1]} : vector<16x32xf32> to vector<8x8xf32>
    %70 = vector.extract_strided_slice %8 {offsets = [0, 24], sizes = [8, 8], strides = [1, 1]} : vector<16x32xf32> to vector<8x8xf32>
    %71 = vector.extract_strided_slice %9 {offsets = [0, 24], sizes = [8, 8], strides = [1, 1]} : vector<16x32xf32> to vector<8x8xf32>
    %72 = tpu.transpose %70, [1, 0] : vector<8x8xf32> -> vector<8x8xf32>
    %cst_24 = arith.constant dense<0.000000e+00> : vector<8x8xf32>
    %73 = tpu.matmul %69, %72, %cst_24 {dimension_numbers = #tpu.dot_dimension_numbers<[1], [0], [0], [1], [0, 0, 1, 1], [], []>} : vector<8x8xf32>, vector<8x8xf32>, vector<8x8xf32> -> vector<8x8xf32>
    %cst_25 = arith.constant dense<0xFF800000> : vector<8xf32>
    %74 = vector.multi_reduction <maximumf>, %73, %cst_25 [1] : vector<8x8xf32> to vector<8xf32>
    %75 = vector.shape_cast %74 : vector<8xf32> to vector<8x1xf32>
    %76 = vector.broadcast %75 : vector<8x1xf32> to vector<8x8xf32>
    %77 = arith.subf %73, %76 : vector<8x8xf32>
    %78 = math.exp %77 : vector<8x8xf32>
    %cst_26 = arith.constant dense<0.000000e+00> : vector<8xf32>
    %79 = vector.multi_reduction <add>, %78, %cst_26 [1] : vector<8x8xf32> to vector<8xf32>
    %80 = vector.shape_cast %79 : vector<8xf32> to vector<8x1xf32>
    %81 = tpu.reciprocal %80 {approx = true} : vector<8x1xf32> -> vector<8x1xf32>
    %82 = vector.broadcast %81 : vector<8x1xf32> to vector<8x8xf32>
    %83 = arith.mulf %78, %82 : vector<8x8xf32>
    %cst_27 = arith.constant dense<0.000000e+00> : vector<8x8xf32>
    %84 = tpu.matmul %83, %71, %cst_27 {dimension_numbers = #tpu.dot_dimension_numbers<[1], [0], [0], [1], [0, 0, 1, 1], [], []>} : vector<8x8xf32>, vector<8x8xf32>, vector<8x8xf32> -> vector<8x8xf32>
    %85 = vector.extract_strided_slice %10 {offsets = [24, 0], sizes = [8, 32], strides = [1, 1]} : vector<32x32xf32> to vector<8x32xf32>
    %cst_28 = arith.constant dense<0.000000e+00> : vector<8x32xf32>
    %86 = tpu.matmul %84, %85, %cst_28 {dimension_numbers = #tpu.dot_dimension_numbers<[1], [0], [0], [1], [0, 0, 1, 1], [], []>} : vector<8x8xf32>, vector<8x32xf32>, vector<8x32xf32> -> vector<8x32xf32>
    %87 = arith.addf %68, %86 : vector<8x32xf32>
    %c0_29 = arith.constant 0 : index
    %c0_30 = arith.constant 0 : index
    %88 = vector.load %arg8[%c0_29, %c0_30] : memref<16x32xf32, #tpu.memory_space<vmem>>, vector<8x32xf32>
    tpu.vector_store %arg8[%c0_29, %c0_30], %87 {strides = array<i32>} : memref<16x32xf32, #tpu.memory_space<vmem>>, vector<8x32xf32>,
    %cst_31 = arith.constant 0.000000e+00 : f32
    %89 = vector.broadcast %cst_31 : f32 to vector<8x32xf32>
    %90 = vector.extract_strided_slice %7 {offsets = [8, 0], sizes = [8, 8], strides = [1, 1]} : vector<16x32xf32> to vector<8x8xf32>
    %91 = vector.extract_strided_slice %8 {offsets = [8, 0], sizes = [8, 8], strides = [1, 1]} : vector<16x32xf32> to vector<8x8xf32>
    %92 = vector.extract_strided_slice %9 {offsets = [8, 0], sizes = [8, 8], strides = [1, 1]} : vector<16x32xf32> to vector<8x8xf32>
    %93 = tpu.transpose %91, [1, 0] : vector<8x8xf32> -> vector<8x8xf32>
    %cst_32 = arith.constant dense<0.000000e+00> : vector<8x8xf32>
    %94 = tpu.matmul %90, %93, %cst_32 {dimension_numbers = #tpu.dot_dimension_numbers<[1], [0], [0], [1], [0, 0, 1, 1], [], []>} : vector<8x8xf32>, vector<8x8xf32>, vector<8x8xf32> -> vector<8x8xf32>
    %cst_33 = arith.constant dense<0xFF800000> : vector<8xf32>
    %95 = vector.multi_reduction <maximumf>, %94, %cst_33 [1] : vector<8x8xf32> to vector<8xf32>
    %96 = vector.shape_cast %95 : vector<8xf32> to vector<8x1xf32>
    %97 = vector.broadcast %96 : vector<8x1xf32> to vector<8x8xf32>
    %98 = arith.subf %94, %97 : vector<8x8xf32>
    %99 = math.exp %98 : vector<8x8xf32>
    %cst_34 = arith.constant dense<0.000000e+00> : vector<8xf32>
    %100 = vector.multi_reduction <add>, %99, %cst_34 [1] : vector<8x8xf32> to vector<8xf32>
    %101 = vector.shape_cast %100 : vector<8xf32> to vector<8x1xf32>
    %102 = tpu.reciprocal %101 {approx = true} : vector<8x1xf32> -> vector<8x1xf32>
    %103 = vector.broadcast %102 : vector<8x1xf32> to vector<8x8xf32>
    %104 = arith.mulf %99, %103 : vector<8x8xf32>
    %cst_35 = arith.constant dense<0.000000e+00> : vector<8x8xf32>
    %105 = tpu.matmul %104, %92, %cst_35 {dimension_numbers = #tpu.dot_dimension_numbers<[1], [0], [0], [1], [0, 0, 1, 1], [], []>} : vector<8x8xf32>, vector<8x8xf32>, vector<8x8xf32> -> vector<8x8xf32>
    %106 = vector.extract_strided_slice %10 {offsets = [0, 0], sizes = [8, 32], strides = [1, 1]} : vector<32x32xf32> to vector<8x32xf32>
    %cst_36 = arith.constant dense<0.000000e+00> : vector<8x32xf32>
    %107 = tpu.matmul %105, %106, %cst_36 {dimension_numbers = #tpu.dot_dimension_numbers<[1], [0], [0], [1], [0, 0, 1, 1], [], []>} : vector<8x8xf32>, vector<8x32xf32>, vector<8x32xf32> -> vector<8x32xf32>
    %108 = arith.addf %89, %107 : vector<8x32xf32>
    %109 = vector.extract_strided_slice %7 {offsets = [8, 8], sizes = [8, 8], strides = [1, 1]} : vector<16x32xf32> to vector<8x8xf32>
    %110 = vector.extract_strided_slice %8 {offsets = [8, 8], sizes = [8, 8], strides = [1, 1]} : vector<16x32xf32> to vector<8x8xf32>
    %111 = vector.extract_strided_slice %9 {offsets = [8, 8], sizes = [8, 8], strides = [1, 1]} : vector<16x32xf32> to vector<8x8xf32>
    %112 = tpu.transpose %110, [1, 0] : vector<8x8xf32> -> vector<8x8xf32>
    %cst_37 = arith.constant dense<0.000000e+00> : vector<8x8xf32>
    %113 = tpu.matmul %109, %112, %cst_37 {dimension_numbers = #tpu.dot_dimension_numbers<[1], [0], [0], [1], [0, 0, 1, 1], [], []>} : vector<8x8xf32>, vector<8x8xf32>, vector<8x8xf32> -> vector<8x8xf32>
    %cst_38 = arith.constant dense<0xFF800000> : vector<8xf32>
    %114 = vector.multi_reduction <maximumf>, %113, %cst_38 [1] : vector<8x8xf32> to vector<8xf32>
    %115 = vector.shape_cast %114 : vector<8xf32> to vector<8x1xf32>
    %116 = vector.broadcast %115 : vector<8x1xf32> to vector<8x8xf32>
    %117 = arith.subf %113, %116 : vector<8x8xf32>
    %118 = math.exp %117 : vector<8x8xf32>
    %cst_39 = arith.constant dense<0.000000e+00> : vector<8xf32>
    %119 = vector.multi_reduction <add>, %118, %cst_39 [1] : vector<8x8xf32> to vector<8xf32>
    %120 = vector.shape_cast %119 : vector<8xf32> to vector<8x1xf32>
    %121 = tpu.reciprocal %120 {approx = true} : vector<8x1xf32> -> vector<8x1xf32>
    %122 = vector.broadcast %121 : vector<8x1xf32> to vector<8x8xf32>
    %123 = arith.mulf %118, %122 : vector<8x8xf32>
    %cst_40 = arith.constant dense<0.000000e+00> : vector<8x8xf32>
    %124 = tpu.matmul %123, %111, %cst_40 {dimension_numbers = #tpu.dot_dimension_numbers<[1], [0], [0], [1], [0, 0, 1, 1], [], []>} : vector<8x8xf32>, vector<8x8xf32>, vector<8x8xf32> -> vector<8x8xf32>
    %125 = vector.extract_strided_slice %10 {offsets = [8, 0], sizes = [8, 32], strides = [1, 1]} : vector<32x32xf32> to vector<8x32xf32>
    %cst_41 = arith.constant dense<0.000000e+00> : vector<8x32xf32>
    %126 = tpu.matmul %124, %125, %cst_41 {dimension_numbers = #tpu.dot_dimension_numbers<[1], [0], [0], [1], [0, 0, 1, 1], [], []>} : vector<8x8xf32>, vector<8x32xf32>, vector<8x32xf32> -> vector<8x32xf32>
    %127 = arith.addf %108, %126 : vector<8x32xf32>
    %128 = vector.extract_strided_slice %7 {offsets = [8, 16], sizes = [8, 8], strides = [1, 1]} : vector<16x32xf32> to vector<8x8xf32>
    %129 = vector.extract_strided_slice %8 {offsets = [8, 16], sizes = [8, 8], strides = [1, 1]} : vector<16x32xf32> to vector<8x8xf32>
    %130 = vector.extract_strided_slice %9 {offsets = [8, 16], sizes = [8, 8], strides = [1, 1]} : vector<16x32xf32> to vector<8x8xf32>
    %131 = tpu.transpose %129, [1, 0] : vector<8x8xf32> -> vector<8x8xf32>
    %cst_42 = arith.constant dense<0.000000e+00> : vector<8x8xf32>
    %132 = tpu.matmul %128, %131, %cst_42 {dimension_numbers = #tpu.dot_dimension_numbers<[1], [0], [0], [1], [0, 0, 1, 1], [], []>} : vector<8x8xf32>, vector<8x8xf32>, vector<8x8xf32> -> vector<8x8xf32>
    %cst_43 = arith.constant dense<0xFF800000> : vector<8xf32>
    %133 = vector.multi_reduction <maximumf>, %132, %cst_43 [1] : vector<8x8xf32> to vector<8xf32>
    %134 = vector.shape_cast %133 : vector<8xf32> to vector<8x1xf32>
    %135 = vector.broadcast %134 : vector<8x1xf32> to vector<8x8xf32>
    %136 = arith.subf %132, %135 : vector<8x8xf32>
    %137 = math.exp %136 : vector<8x8xf32>
    %cst_44 = arith.constant dense<0.000000e+00> : vector<8xf32>
    %138 = vector.multi_reduction <add>, %137, %cst_44 [1] : vector<8x8xf32> to vector<8xf32>
    %139 = vector.shape_cast %138 : vector<8xf32> to vector<8x1xf32>
    %140 = tpu.reciprocal %139 {approx = true} : vector<8x1xf32> -> vector<8x1xf32>
    %141 = vector.broadcast %140 : vector<8x1xf32> to vector<8x8xf32>
    %142 = arith.mulf %137, %141 : vector<8x8xf32>
    %cst_45 = arith.constant dense<0.000000e+00> : vector<8x8xf32>
    %143 = tpu.matmul %142, %130, %cst_45 {dimension_numbers = #tpu.dot_dimension_numbers<[1], [0], [0], [1], [0, 0, 1, 1], [], []>} : vector<8x8xf32>, vector<8x8xf32>, vector<8x8xf32> -> vector<8x8xf32>
    %144 = vector.extract_strided_slice %10 {offsets = [16, 0], sizes = [8, 32], strides = [1, 1]} : vector<32x32xf32> to vector<8x32xf32>
    %cst_46 = arith.constant dense<0.000000e+00> : vector<8x32xf32>
    %145 = tpu.matmul %143, %144, %cst_46 {dimension_numbers = #tpu.dot_dimension_numbers<[1], [0], [0], [1], [0, 0, 1, 1], [], []>} : vector<8x8xf32>, vector<8x32xf32>, vector<8x32xf32> -> vector<8x32xf32>
    %146 = arith.addf %127, %145 : vector<8x32xf32>
    %147 = vector.extract_strided_slice %7 {offsets = [8, 24], sizes = [8, 8], strides = [1, 1]} : vector<16x32xf32> to vector<8x8xf32>
    %148 = vector.extract_strided_slice %8 {offsets = [8, 24], sizes = [8, 8], strides = [1, 1]} : vector<16x32xf32> to vector<8x8xf32>
    %149 = vector.extract_strided_slice %9 {offsets = [8, 24], sizes = [8, 8], strides = [1, 1]} : vector<16x32xf32> to vector<8x8xf32>
    %150 = tpu.transpose %148, [1, 0] : vector<8x8xf32> -> vector<8x8xf32>
    %cst_47 = arith.constant dense<0.000000e+00> : vector<8x8xf32>
    %151 = tpu.matmul %147, %150, %cst_47 {dimension_numbers = #tpu.dot_dimension_numbers<[1], [0], [0], [1], [0, 0, 1, 1], [], []>} : vector<8x8xf32>, vector<8x8xf32>, vector<8x8xf32> -> vector<8x8xf32>
    %cst_48 = arith.constant dense<0xFF800000> : vector<8xf32>
    %152 = vector.multi_reduction <maximumf>, %151, %cst_48 [1] : vector<8x8xf32> to vector<8xf32>
    %153 = vector.shape_cast %152 : vector<8xf32> to vector<8x1xf32>
    %154 = vector.broadcast %153 : vector<8x1xf32> to vector<8x8xf32>
    %155 = arith.subf %151, %154 : vector<8x8xf32>
    %156 = math.exp %155 : vector<8x8xf32>
    %cst_49 = arith.constant dense<0.000000e+00> : vector<8xf32>
    %157 = vector.multi_reduction <add>, %156, %cst_49 [1] : vector<8x8xf32> to vector<8xf32>
    %158 = vector.shape_cast %157 : vector<8xf32> to vector<8x1xf32>
    %159 = tpu.reciprocal %158 {approx = true} : vector<8x1xf32> -> vector<8x1xf32>
    %160 = vector.broadcast %159 : vector<8x1xf32> to vector<8x8xf32>
    %161 = arith.mulf %156, %160 : vector<8x8xf32>
    %cst_50 = arith.constant dense<0.000000e+00> : vector<8x8xf32>
    %162 = tpu.matmul %161, %149, %cst_50 {dimension_numbers = #tpu.dot_dimension_numbers<[1], [0], [0], [1], [0, 0, 1, 1], [], []>} : vector<8x8xf32>, vector<8x8xf32>, vector<8x8xf32> -> vector<8x8xf32>
    %163 = vector.extract_strided_slice %10 {offsets = [24, 0], sizes = [8, 32], strides = [1, 1]} : vector<32x32xf32> to vector<8x32xf32>
    %cst_51 = arith.constant dense<0.000000e+00> : vector<8x32xf32>
    %164 = tpu.matmul %162, %163, %cst_51 {dimension_numbers = #tpu.dot_dimension_numbers<[1], [0], [0], [1], [0, 0, 1, 1], [], []>} : vector<8x8xf32>, vector<8x32xf32>, vector<8x32xf32> -> vector<8x32xf32>
    %165 = arith.addf %146, %164 : vector<8x32xf32>
    %c8 = arith.constant 8 : index
    %c0_52 = arith.constant 0 : index
    %166 = vector.load %arg8[%c8, %c0_52] : memref<16x32xf32, #tpu.memory_space<vmem>>, vector<8x32xf32>
    tpu.vector_store %arg8[%c8, %c0_52], %165 {strides = array<i32>} : memref<16x32xf32, #tpu.memory_space<vmem>>, vector<8x32xf32>,
    %c0_53 = arith.constant 0 : index
    %c0_54 = arith.constant 0 : index
    %167 = vector.load %arg8[%c0_53, %c0_54] : memref<16x32xf32, #tpu.memory_space<vmem>>, vector<16x32xf32>
    %c0_55 = arith.constant 0 : index
    %c0_56 = arith.constant 0 : index
    %168 = vector.load %arg5[%c0_55, %c0_56] : memref<1x32xf32, #tpu.memory_space<vmem>>, vector<1x32xf32>
    %169 = vector.broadcast %168 : vector<1x32xf32> to vector<16x32xf32>
    %170 = arith.addf %167, %169 : vector<16x32xf32>
    %171 = arith.addf %170, %1 : vector<16x32xf32>
    %c0_57 = arith.constant 0 : index
    %c0_58 = arith.constant 0 : index
    %172 = vector.load %arg6[%c0_57, %c0_58] : memref<32x32xf32, #tpu.memory_space<vmem>>, vector<32x32xf32>
    %cst_59 = arith.constant dense<0.000000e+00> : vector<16x32xf32>
    %173 = tpu.matmul %171, %172, %cst_59 {dimension_numbers = #tpu.dot_dimension_numbers<[1], [0], [0], [1], [0, 0, 1, 1], [], []>} : vector<16x32xf32>, vector<32x32xf32>, vector<16x32xf32> -> vector<16x32xf32>
    %174 = arith.addf %173, %171 : vector<16x32xf32>
    %c0_60 = arith.constant 0 : index
    %c0_61 = arith.constant 0 : index
    %c0_62 = arith.constant 0 : index
    %175 = vector.load %arg7[%c0_60, %c0_61, %c0_62] : memref<1x16x32xf32, #tpu.memory_space<vmem>>, vector<1x16x32xf32>
    %176 = vector.shape_cast %175 : vector<1x16x32xf32> to vector<16x32xf32>
    %177 = vector.shape_cast %174 : vector<16x32xf32> to vector<1x16x32xf32>
    tpu.vector_store %arg7[%c0_60, %c0_61, %c0_62], %177 {strides = array<i32>} : memref<1x16x32xf32, #tpu.memory_space<vmem>>, vector<1x16x32xf32>,
    return
  }
  func.func @transform_0(%arg0: i32) -> (i32, i32, i32) {
    %c0_i32 = arith.constant 0 : i32
    %c0_i32_0 = arith.constant 0 : i32
    %c0_i32_1 = arith.constant 0 : i32
    return %arg0, %c0_i32, %c0_i32_0 : i32, i32, i32
  }
  func.func @transform_1(%arg0: i32) -> (i32, i32) {
    %c0_i32 = arith.constant 0 : i32
    %c0_i32_0 = arith.constant 0 : i32
    %c0_i32_1 = arith.constant 0 : i32
    return %c0_i32, %c0_i32_0 : i32, i32
  }
  func.func @transform_2(%arg0: i32) -> (i32, i32) {
    %c0_i32 = arith.constant 0 : i32
    %c0_i32_0 = arith.constant 0 : i32
    %c0_i32_1 = arith.constant 0 : i32
    return %c0_i32, %c0_i32_0 : i32, i32
  }
  func.func @transform_3(%arg0: i32) -> (i32, i32) {
    %c0_i32 = arith.constant 0 : i32
    %c0_i32_0 = arith.constant 0 : i32
    %c0_i32_1 = arith.constant 0 : i32
    return %c0_i32, %c0_i32_0 : i32, i32
  }
  func.func @transform_4(%arg0: i32) -> (i32, i32) {
    %c0_i32 = arith.constant 0 : i32
    %c0_i32_0 = arith.constant 0 : i32
    %c0_i32_1 = arith.constant 0 : i32
    return %c0_i32, %c0_i32_0 : i32, i32
  }
  func.func @transform_5(%arg0: i32) -> (i32, i32) {
    %c0_i32 = arith.constant 0 : i32
    %c0_i32_0 = arith.constant 0 : i32
    %c0_i32_1 = arith.constant 0 : i32
    return %c0_i32, %c0_i32_0 : i32, i32
  }
  func.func @transform_6(%arg0: i32) -> (i32, i32, i32) {
    %c0_i32 = arith.constant 0 : i32
    %c0_i32_0 = arith.constant 0 : i32
    %c0_i32_1 = arith.constant 0 : i32
    return %arg0, %c0_i32, %c0_i32_0 : i32, i32, i32
  }
}

</mosaic_0001>

<llo_original>
// kernel: tpu_custom_call.1
$region0: #{tpu_custom_call.1}
  #allocation0 [shape = 'u32[]', space=smem, size = 0x4, offset = 0x4, fixed_abs, tag = 'smem constant byte address 0x4 - core index']
  #allocation1 [shape = 'u32[144,128]{1,0:T(1,128)}', space=vmem, size = 0x12000, scoped, tag = 'internal scratch']
  #allocation2 [shape = 'f32[16,32]{1,0:T(8,128)}', space=vmem, size = 0x2000, scoped, tag = 'scratch operand']
  %s0 = inlined_call_operand.hbm [shape: f32[1,16,32], index: 0, kind: input, shape index: {}]
  %s1 = inlined_call_operand.hbm [shape: f32[32,96], index: 1, kind: input, shape index: {}]
  %s2 = inlined_call_operand.vmem [shape: f32[1,96], index: 2, kind: input, shape index: {}]
  %s3 = inlined_call_operand.hbm [shape: f32[32,32], index: 3, kind: input, shape index: {}]
  %s4 = inlined_call_operand.vmem [shape: f32[1,32], index: 4, kind: input, shape index: {}]
  %s5 = inlined_call_operand.hbm [shape: f32[32,32], index: 5, kind: input, shape index: {}]
  %s6 = inlined_call_operand.hbm [shape: f32[1,16,32], index: 6, kind: output, shape index: {}]
  %s7 = sld [smem:[#allocation0]]
  $region50: #{tpu_custom_call.1} parent=0
    _
  %s9 = ssub.s32 1, %s7
  %s10 = scalar_select 0, %s9, %s7
  $region1: #{tpu_custom_call.1} parent=0
    #allocation3 [shape = 'u8[8192]{0}', space=vmem, size = 0x2000, scoped, tag = 'input window, operand 0, single buffered']
    #allocation4 [shape = 's32[1]{0}', space=sflag, size = 0x4, scoped, tag = 'scoped memory for tpu_custom_call.1']
    #allocation5 [shape = 's32[1]{0}', space=sflag, size = 0x4, scoped, tag = 'scoped memory for tpu_custom_call.1']
    #allocation6 [shape = 'u8[16384]{0}', space=vmem, size = 0x4000, scoped, tag = 'input window, operand 1, single buffered']
    #allocation7 [shape = 's32[1]{0}', space=sflag, size = 0x4, scoped, tag = 'scoped memory for tpu_custom_call.1']
    #allocation8 [shape = 'u8[16384]{0}', space=vmem, size = 0x4000, scoped, tag = 'input window, operand 3, single buffered']
    #allocation9 [shape = 'u8[16384]{0}', space=vmem, size = 0x4000, scoped, tag = 'input window, operand 5, single buffered']
    #allocation10 [shape = 's32[1]{0}', space=sflag, size = 0x4, scoped, tag = 'scoped memory for tpu_custom_call.1']
    #allocation11 [shape = 'u8[8192]{0}', space=vmem, size = 0x2000, scoped, tag = 'output window, operand 0, single buffered']
    %11 = vsyncpa [#allocation4], 0
    %12 = vsyncpa [#allocation7], 0
    %13 = vsyncpa [#allocation10], 0
    %14 = vsyncpa [#allocation5], 0
    // Predicated region
    $region2: #{tpu_custom_call.1} parent=1 // pred_check
      _
    $region3: #{tpu_custom_call.1} parent=1 // pred_check_branch
      %16 = sbr.rel (0) target = $region5
    $region4: #{tpu_custom_call.1} parent=1 // pred_region
      %s18 = ssub.s32 256, 256
      %19 = vsyncadd [#allocation4], %s18
      %s20 = sshll.u32 [#allocation3], 4
      %s21 = int_to_ptr.vmem [resolvable:$true] %s20
      %26 = dma.hbm_to_vmem [thread:$0]  %s0, 256, %s21, [#allocation4], 128, 128, 8
    $region5: #{tpu_custom_call.1} parent=1 // pred_fallthru
      _
    // Predicated region
    $region6: #{tpu_custom_call.1} parent=1 // pred_check
      _
    $region7: #{tpu_custom_call.1} parent=1 // pred_check_branch
      %28 = sbr.rel (0) target = $region9
    $region8: #{tpu_custom_call.1} parent=1 // pred_region
      %s30 = ssub.s32 512, 512
      %31 = vsyncadd [#allocation7], %s30
      %s32 = sshll.u32 [#allocation6], 4
      %s33 = int_to_ptr.vmem [resolvable:$true] %s32
      %38 = dma.hbm_to_vmem [thread:$0]  %s1, 512, %s33, [#allocation7], 128, 128, 8
    $region9: #{tpu_custom_call.1} parent=1 // pred_fallthru
      _
    // Predicated region
    $region10: #{tpu_custom_call.1} parent=1 // pred_check
      _
    $region11: #{tpu_custom_call.1} parent=1 // pred_check_branch
      %40 = sbr.rel (0) target = $region13
    $region12: #{tpu_custom_call.1} parent=1 // pred_region
      _
    $region13: #{tpu_custom_call.1} parent=1 // pred_fallthru
      _
    // Predicated region
    $region14: #{tpu_custom_call.1} parent=1 // pred_check
      _
    $region15: #{tpu_custom_call.1} parent=1 // pred_check_branch
      %42 = sbr.rel (0) target = $region17
    $region16: #{tpu_custom_call.1} parent=1 // pred_region
      %s44 = ssub.s32 512, 512
      %45 = vsyncadd [#allocation7], %s44
      %s46 = sshll.u32 [#allocation8], 4
      %s47 = int_to_ptr.vmem [resolvable:$true] %s46
      %52 = dma.hbm_to_vmem [thread:$0]  %s3, 512, %s47, [#allocation7], 128, 128, 8
    $region17: #{tpu_custom_call.1} parent=1 // pred_fallthru
      _
    // Predicated region
    $region18: #{tpu_custom_call.1} parent=1 // pred_check
      _
    $region19: #{tpu_custom_call.1} parent=1 // pred_check_branch
      %54 = sbr.rel (0) target = $region21
    $region20: #{tpu_custom_call.1} parent=1 // pred_region
      _
    $region21: #{tpu_custom_call.1} parent=1 // pred_fallthru
      _
    // Predicated region
    $region22: #{tpu_custom_call.1} parent=1 // pred_check
      _
    $region23: #{tpu_custom_call.1} parent=1 // pred_check_branch
      %56 = sbr.rel (0) target = $region25
    $region24: #{tpu_custom_call.1} parent=1 // pred_region
      %s58 = ssub.s32 512, 512
      %59 = vsyncadd [#allocation10], %s58
      %s60 = sshll.u32 [#allocation9], 4
      %s61 = int_to_ptr.vmem [resolvable:$true] %s60
      %66 = dma.hbm_to_vmem [thread:$0]  %s5, 512, %s61, [#allocation10], 128, 128, 8
    $region25: #{tpu_custom_call.1} parent=1 // pred_fallthru
      _
    // Predicated region
    $region26: #{tpu_custom_call.1} parent=1 // pred_check
      _
    $region27: #{tpu_custom_call.1} parent=1 // pred_check_branch
      %68 = sbr.rel (0) target = $region29
    $region28: #{tpu_custom_call.1} parent=1 // pred_region
      %69 = dma.done [#allocation4], 256
    $region29: #{tpu_custom_call.1} parent=1 // pred_fallthru
      _
    // Predicated region
    $region30: #{tpu_custom_call.1} parent=1 // pred_check
      _
    $region31: #{tpu_custom_call.1} parent=1 // pred_check_branch
      %71 = sbr.rel (0) target = $region33
    $region32: #{tpu_custom_call.1} parent=1 // pred_region
      %72 = dma.done [#allocation7], 512
    $region33: #{tpu_custom_call.1} parent=1 // pred_fallthru
      _
    // Predicated region
    $region34: #{tpu_custom_call.1} parent=1 // pred_check
      _
    $region35: #{tpu_custom_call.1} parent=1 // pred_check_branch
      %74 = sbr.rel (0) target = $region37
    $region36: #{tpu_custom_call.1} parent=1 // pred_region
      %75 = dma.done [#allocation7], 512
    $region37: #{tpu_custom_call.1} parent=1 // pred_fallthru
      _
    // Predicated region
    $region38: #{tpu_custom_call.1} parent=1 // pred_check
      _
    $region39: #{tpu_custom_call.1} parent=1 // pred_check_branch
      %77 = sbr.rel (0) target = $region41
    $region40: #{tpu_custom_call.1} parent=1 // pred_region
      %78 = dma.done [#allocation10], 512
    $region41: #{tpu_custom_call.1} parent=1 // pred_fallthru
      _
    %v79 = vld [vmem:[#allocation3] sm:$0xff]
    %v80 = vld [vmem:[#allocation3 + $0x8] sm:$0xff]
    %v81 = vld [vmem:[#allocation6] sm:$0xff]
    %v82 = vld [vmem:[#allocation6 + $0x8] sm:$0xff]
    %v83 = vld [vmem:[#allocation6 + $0x10] sm:$0xff]
    %v84 = vld [vmem:[#allocation6 + $0x18] sm:$0xff]
    %v85 = vld [vmem:[%s2] sm:$0x1]
    %v87 = vlaneseq
    %v88 = vshrl.u32 %v87, 7
    %v89 = vsub.s32 0, %v88
    %v90 = vrot.slane %v85, %v89
    %vm92 = vcmask 261120
    %v94 = vsel %vm92, %v79, 0
    %v97 = vsel %vm92, %v80, 0
    %99 = vmatprep.subr.mxu0 0.0
    %100 = vmatpush1.msra.mxu0 0.0
    %101 = vmatprep.subr.mxu0 0.0
    %102 = vmatpush1.msra.mxu0 0.0
    %103 = vmatprep.subr.mxu0 0.0
    %104 = vmatpush1.msra.mxu0 0.0
    %105 = vmatprep.subr.mxu0 0.0
    %106 = vmatpush1.msra.mxu0 0.0
    %107 = vmatprep.subr.mxu0 0.0
    %108 = vmatpush1.msra.mxu0 0.0
    %109 = vmatprep.subr.mxu0 0.0
    %110 = vmatpush1.msra.mxu0 0.0
    %111 = vmatprep.subr.mxu0 0.0
    %112 = vmatpush1.msra.mxu0 0.0
    %113 = vmatprep.subr.mxu0 0.0
    %114 = vmatpush1.msra.mxu0 0.0
    %115 = vmatprep.subr.mxu0 0.0
    %116 = vmatpush1.msra.mxu0 0.0
    %117 = vmatprep.subr.mxu0 0.0
    %118 = vmatpush1.msra.mxu0 0.0
    %119 = vmatprep.subr.mxu0 0.0
    %120 = vmatpush1.msra.mxu0 0.0
    %121 = vmatprep.subr.mxu0 0.0
    %122 = vmatpush1.msra.mxu0 0.0
    %123 = vmatprep.subr.mxu0 0.0
    %124 = vmatpush1.msra.mxu0 %v84
    %125 = vmatprep.subr.mxu0 0.0
    %126 = vmatpush1.msra.mxu0 %v83
    %127 = vmatprep.subr.mxu0 0.0
    %128 = vmatpush1.msra.mxu0 %v82
    %129 = vmatprep.subr.mxu0 0.0
    %130 = vmatpush1.msra.mxu0 %v81
    %131 = vmatprep.subr.mxu0 0.0
    %132 = vmatpush2.msra.mxu0 0.0
    %133 = vmatprep.subr.mxu0 0.0
    %134 = vmatpush2.msra.mxu0 0.0
    %135 = vmatprep.subr.mxu0 0.0
    %136 = vmatpush2.msra.mxu0 0.0
    %137 = vmatprep.subr.mxu0 0.0
    %138 = vmatpush2.msra.mxu0 0.0
    %139 = vmatprep.subr.mxu0 0.0
    %140 = vmatpush2.msra.mxu0 0.0
    %141 = vmatprep.subr.mxu0 0.0
    %142 = vmatpush2.msra.mxu0 0.0
    %143 = vmatprep.subr.mxu0 0.0
    %144 = vmatpush2.msra.mxu0 0.0
    %145 = vmatprep.subr.mxu0 0.0
    %146 = vmatpush2.msra.mxu0 0.0
    %147 = vmatprep.subr.mxu0 0.0
    %148 = vmatpush2.msra.mxu0 0.0
    %149 = vmatprep.subr.mxu0 0.0
    %150 = vmatpush2.msra.mxu0 0.0
    %151 = vmatprep.subr.mxu0 0.0
    %152 = vmatpush2.msra.mxu0 0.0
    %153 = vmatprep.subr.mxu0 0.0
    %154 = vmatpush2.msra.mxu0 0.0
    %155 = vmatprep.subr.mxu0 0.0
    %156 = vmatpush2.msra.mxu0 0.0
    %157 = vmatprep.subr.mxu0 0.0
    %158 = vmatpush2.msra.mxu0 0.0
    %159 = vmatprep.subr.mxu0 0.0
    %160 = vmatpush2.msra.mxu0 0.0
    %161 = vmatprep.subr.mxu0 0.0
    %162 = vmatpush2.msra.mxu0 0.0
    %163 = vmatprep.mubr.f32.mxu0 0.0
    %164 = vmatmul.mubr.f32.gmra.mxu0 %v94
    %v165 = vpop.f32.mrf.mxu0
    %v166 = vadd.f32 %v90, %v165
    %v167 = vpop.f32.mrf.mxu0
    %168 = vmatprep.mubr.f32.mxu0 0.0
    %169 = vmatmul.mubr.f32.gmra.mxu0 %v97
    %v170 = vpop.f32.mrf.mxu0
    %v171 = vadd.f32 %v90, %v170
    %v172 = vpop.f32.mrf.mxu0
    %173 = vdwg.mxu0
    %v174 = vld [vmem:[#allocation8] sm:$0xff]
    %v175 = vld [vmem:[#allocation8 + $0x8] sm:$0xff]
    %v176 = vld [vmem:[#allocation8 + $0x10] sm:$0xff]
    %v177 = vld [vmem:[#allocation8 + $0x18] sm:$0xff]
    %179 = vrot.lane.b32.xlu0 %v166, 96
    %v180 = vpop.permute.xlu0 %179
    %vm181 = vcmask 64512
    %v182 = vsel %vm181, %v166, 0
    %v184 = vsel %vm181, %v180, 0
    %186 = vmatprep.subr.mxu0 0.0
    %187 = vmatpush1.xpose.msra.mxu0 0.0
    %188 = vmatprep.subr.mxu0 0.0
    %189 = vmatpush1.xpose.msra.mxu0 0.0
    %190 = vmatprep.subr.mxu0 0.0
    %191 = vmatpush1.xpose.msra.mxu0 0.0
    %192 = vmatprep.subr.mxu0 0.0
    %193 = vmatpush1.xpose.msra.mxu0 0.0
    %194 = vmatprep.subr.mxu0 0.0
    %195 = vmatpush1.xpose.msra.mxu0 0.0
    %196 = vmatprep.subr.mxu0 0.0
    %197 = vmatpush1.xpose.msra.mxu0 0.0
    %198 = vmatprep.subr.mxu0 0.0
    %199 = vmatpush1.xpose.msra.mxu0 0.0
    %200 = vmatprep.subr.mxu0 0.0
    %201 = vmatpush1.xpose.msra.mxu0 0.0
    %202 = vmatprep.subr.mxu0 0.0
    %203 = vmatpush1.xpose.msra.mxu0 0.0
    %204 = vmatprep.subr.mxu0 0.0
    %205 = vmatpush1.xpose.msra.mxu0 0.0
    %206 = vmatprep.subr.mxu0 0.0
    %207 = vmatpush1.xpose.msra.mxu0 0.0
    %208 = vmatprep.subr.mxu0 0.0
    %209 = vmatpush1.xpose.msra.mxu0 0.0
    %210 = vmatprep.subr.mxu0 0.0
    %211 = vmatpush1.xpose.msra.mxu0 0.0
    %212 = vmatprep.subr.mxu0 0.0
    %213 = vmatpush1.xpose.msra.mxu0 0.0
    %214 = vmatprep.subr.mxu0 0.0
    %215 = vmatpush1.xpose.msra.mxu0 0.0
    %216 = vmatprep.subr.mxu0 0.0
    %217 = vmatpush1.xpose.msra.mxu0 %v184
    %218 = vmatprep.subr.mxu0 0.0
    %219 = vmatpush2.xpose.msra.mxu0 0.0
    %220 = vmatprep.subr.mxu0 0.0
    %221 = vmatpush2.xpose.msra.mxu0 0.0
    %222 = vmatprep.subr.mxu0 0.0
    %223 = vmatpush2.xpose.msra.mxu0 0.0
    %224 = vmatprep.subr.mxu0 0.0
    %225 = vmatpush2.xpose.msra.mxu0 0.0
    %226 = vmatprep.subr.mxu0 0.0
    %227 = vmatpush2.xpose.msra.mxu0 0.0
    %228 = vmatprep.subr.mxu0 0.0
    %229 = vmatpush2.xpose.msra.mxu0 0.0
    %230 = vmatprep.subr.mxu0 0.0
    %231 = vmatpush2.xpose.msra.mxu0 0.0
    %232 = vmatprep.subr.mxu0 0.0
    %233 = vmatpush2.xpose.msra.mxu0 0.0
    %234 = vmatprep.subr.mxu0 0.0
    %235 = vmatpush2.xpose.msra.mxu0 0.0
    %236 = vmatprep.subr.mxu0 0.0
    %237 = vmatpush2.xpose.msra.mxu0 0.0
    %238 = vmatprep.subr.mxu0 0.0
    %239 = vmatpush2.xpose.msra.mxu0 0.0
    %240 = vmatprep.subr.mxu0 0.0
    %241 = vmatpush2.xpose.msra.mxu0 0.0
    %242 = vmatprep.subr.mxu0 0.0
    %243 = vmatpush2.xpose.msra.mxu0 0.0
    %244 = vmatprep.subr.mxu0 0.0
    %245 = vmatpush2.xpose.msra.mxu0 0.0
    %246 = vmatprep.subr.mxu0 0.0
    %247 = vmatpush2.xpose.msra.mxu0 0.0
    %248 = vmatprep.subr.mxu0 0.0
    %249 = vmatpush2.xpose.msra.mxu0 0.0
    %250 = vmatprep.mubr.f32.mxu0 0.0
    %251 = vmatmul.mubr.f32.gmra.mxu0 %v182
    %v252 = vpop.f32.mrf.mxu0
    %v253 = vadd.f32 0.0, %v252
    %v254 = vpop.f32.mrf.mxu0
    %255 = vdwg.mxu0
    %v256 = vsel %vm181, %v253, -inf
    %257 = vmax.xlane.f32.xlu0 %v256
    %v258 = vpop.xlane.xlu0 %257
    %v259 = vsub.f32 %v253, %v258
    %v260 = vmul.f32 %v259, 1.442695
    %v261 = vpow.pop %v260
    %v262 = vsel %vm181, %v261, 0.0
    %263 = vadd.xlane.f32.xlu0 %v262
    %v264 = vpop.xlane.xlu0 %263
    %v265 = vrcp.pop %v264
    %v266 = vmul.f32 %v261, %v265
    %267 = vrot.lane.b32.xlu0 %v166, 64
    %v268 = vpop.permute.xlu0 %267
    %v271 = vsel %vm181, %v266, 0
    %273 = vmatprep.subr.mxu0 0.0
    %274 = vmatpush1.msra.mxu0 0.0
    %275 = vmatprep.subr.mxu0 0.0
    %276 = vmatpush1.msra.mxu0 0.0
    %277 = vmatprep.subr.mxu0 0.0
    %278 = vmatpush1.msra.mxu0 0.0
    %279 = vmatprep.subr.mxu0 0.0
    %280 = vmatpush1.msra.mxu0 0.0
    %281 = vmatprep.subr.mxu0 0.0
    %282 = vmatpush1.msra.mxu0 0.0
    %283 = vmatprep.subr.mxu0 0.0
    %284 = vmatpush1.msra.mxu0 0.0
    %285 = vmatprep.subr.mxu0 0.0
    %286 = vmatpush1.msra.mxu0 0.0
    %287 = vmatprep.subr.mxu0 0.0
    %288 = vmatpush1.msra.mxu0 0.0
    %289 = vmatprep.subr.mxu0 0.0
    %290 = vmatpush1.msra.mxu0 0.0
    %291 = vmatprep.subr.mxu0 0.0
    %292 = vmatpush1.msra.mxu0 0.0
    %293 = vmatprep.subr.mxu0 0.0
    %294 = vmatpush1.msra.mxu0 0.0
    %295 = vmatprep.subr.mxu0 0.0
    %296 = vmatpush1.msra.mxu0 0.0
    %297 = vmatprep.subr.mxu0 0.0
    %298 = vmatpush1.msra.mxu0 0.0
    %299 = vmatprep.subr.mxu0 0.0
    %300 = vmatpush1.msra.mxu0 0.0
    %301 = vmatprep.subr.mxu0 0.0
    %302 = vmatpush1.msra.mxu0 0.0
    %303 = vmatprep.subr.mxu0 0.0
    %304 = vmatpush1.msra.mxu0 %v268
    %305 = vmatprep.subr.mxu0 0.0
    %306 = vmatpush2.msra.mxu0 0.0
    %307 = vmatprep.subr.mxu0 0.0
    %308 = vmatpush2.msra.mxu0 0.0
    %309 = vmatprep.subr.mxu0 0.0
    %310 = vmatpush2.msra.mxu0 0.0
    %311 = vmatprep.subr.mxu0 0.0
    %312 = vmatpush2.msra.mxu0 0.0
    %313 = vmatprep.subr.mxu0 0.0
    %314 = vmatpush2.msra.mxu0 0.0
    %315 = vmatprep.subr.mxu0 0.0
    %316 = vmatpush2.msra.mxu0 0.0
    %317 = vmatprep.subr.mxu0 0.0
    %318 = vmatpush2.msra.mxu0 0.0
    %319 = vmatprep.subr.mxu0 0.0
    %320 = vmatpush2.msra.mxu0 0.0
    %321 = vmatprep.subr.mxu0 0.0
    %322 = vmatpush2.msra.mxu0 0.0
    %323 = vmatprep.subr.mxu0 0.0
    %324 = vmatpush2.msra.mxu0 0.0
    %325 = vmatprep.subr.mxu0 0.0
    %326 = vmatpush2.msra.mxu0 0.0
    %327 = vmatprep.subr.mxu0 0.0
    %328 = vmatpush2.msra.mxu0 0.0
    %329 = vmatprep.subr.mxu0 0.0
    %330 = vmatpush2.msra.mxu0 0.0
    %331 = vmatprep.subr.mxu0 0.0
    %332 = vmatpush2.msra.mxu0 0.0
    %333 = vmatprep.subr.mxu0 0.0
    %334 = vmatpush2.msra.mxu0 0.0
    %335 = vmatprep.subr.mxu0 0.0
    %336 = vmatpush2.msra.mxu0 0.0
    %337 = vmatprep.mubr.f32.mxu0 0.0
    %338 = vmatmul.mubr.f32.gmra.mxu0 %v271
    %v339 = vpop.f32.mrf.mxu0
    %v340 = vadd.f32 0.0, %v339
    %v341 = vpop.f32.mrf.mxu0
    %342 = vdwg.mxu0
    %343 = vrot.lane.b32.xlu0 %v166, 120
    %v344 = vpop.permute.xlu0 %343
    %345 = vrot.lane.b32.xlu0 %v166, 88
    %v346 = vpop.permute.xlu0 %345
    %v347 = vsel %vm181, %v344, 0
    %v349 = vsel %vm181, %v346, 0
    %351 = vmatprep.subr.mxu0 0.0
    %352 = vmatpush1.xpose.msra.mxu0 0.0
    %353 = vmatprep.subr.mxu0 0.0
    %354 = vmatpush1.xpose.msra.mxu0 0.0
    %355 = vmatprep.subr.mxu0 0.0
    %356 = vmatpush1.xpose.msra.mxu0 0.0
    %357 = vmatprep.subr.mxu0 0.0
    %358 = vmatpush1.xpose.msra.mxu0 0.0
    %359 = vmatprep.subr.mxu0 0.0
    %360 = vmatpush1.xpose.msra.mxu0 0.0
    %361 = vmatprep.subr.mxu0 0.0
    %362 = vmatpush1.xpose.msra.mxu0 0.0
    %363 = vmatprep.subr.mxu0 0.0
    %364 = vmatpush1.xpose.msra.mxu0 0.0
    %365 = vmatprep.subr.mxu0 0.0
    %366 = vmatpush1.xpose.msra.mxu0 0.0
    %367 = vmatprep.subr.mxu0 0.0
    %368 = vmatpush1.xpose.msra.mxu0 0.0
    %369 = vmatprep.subr.mxu0 0.0
    %370 = vmatpush1.xpose.msra.mxu0 0.0
    %371 = vmatprep.subr.mxu0 0.0
    %372 = vmatpush1.xpose.msra.mxu0 0.0
    %373 = vmatprep.subr.mxu0 0.0
    %374 = vmatpush1.xpose.msra.mxu0 0.0
    %375 = vmatprep.subr.mxu0 0.0
    %376 = vmatpush1.xpose.msra.mxu0 0.0
    %377 = vmatprep.subr.mxu0 0.0
    %378 = vmatpush1.xpose.msra.mxu0 0.0
    %379 = vmatprep.subr.mxu0 0.0
    %380 = vmatpush1.xpose.msra.mxu0 0.0
    %381 = vmatprep.subr.mxu0 0.0
    %382 = vmatpush1.xpose.msra.mxu0 %v349
    %383 = vmatprep.subr.mxu0 0.0
    %384 = vmatpush2.xpose.msra.mxu0 0.0
    %385 = vmatprep.subr.mxu0 0.0
    %386 = vmatpush2.xpose.msra.mxu0 0.0
    %387 = vmatprep.subr.mxu0 0.0
    %388 = vmatpush2.xpose.msra.mxu0 0.0
    %389 = vmatprep.subr.mxu0 0.0
    %390 = vmatpush2.xpose.msra.mxu0 0.0
    %391 = vmatprep.subr.mxu0 0.0
    %392 = vmatpush2.xpose.msra.mxu0 0.0
    %393 = vmatprep.subr.mxu0 0.0
    %394 = vmatpush2.xpose.msra.mxu0 0.0
    %395 = vmatprep.subr.mxu0 0.0
    %396 = vmatpush2.xpose.msra.mxu0 0.0
    %397 = vmatprep.subr.mxu0 0.0
    %398 = vmatpush2.xpose.msra.mxu0 0.0
    %399 = vmatprep.subr.mxu0 0.0
    %400 = vmatpush2.xpose.msra.mxu0 0.0
    %401 = vmatprep.subr.mxu0 0.0
    %402 = vmatpush2.xpose.msra.mxu0 0.0
    %403 = vmatprep.subr.mxu0 0.0
    %404 = vmatpush2.xpose.msra.mxu0 0.0
    %405 = vmatprep.subr.mxu0 0.0
    %406 = vmatpush2.xpose.msra.mxu0 0.0
    %407 = vmatprep.subr.mxu0 0.0
    %408 = vmatpush2.xpose.msra.mxu0 0.0
    %409 = vmatprep.subr.mxu0 0.0
    %410 = vmatpush2.xpose.msra.mxu0 0.0
    %411 = vmatprep.subr.mxu0 0.0
    %412 = vmatpush2.xpose.msra.mxu0 0.0
    %413 = vmatprep.subr.mxu0 0.0
    %414 = vmatpush2.xpose.msra.mxu0 0.0
    %415 = vmatprep.mubr.f32.mxu0 0.0
    %416 = vmatmul.mubr.f32.gmra.mxu0 %v347
    %v417 = vpop.f32.mrf.mxu0
    %v418 = vadd.f32 0.0, %v417
    %v419 = vpop.f32.mrf.mxu0
    %420 = vdwg.mxu0
    %v421 = vsel %vm181, %v418, -inf
    %422 = vmax.xlane.f32.xlu0 %v421
    %v423 = vpop.xlane.xlu0 %422
    %v424 = vsub.f32 %v418, %v423
    %v425 = vmul.f32 %v424, 1.442695
    %v426 = vpow.pop %v425
    %v427 = vsel %vm181, %v426, 0.0
    %428 = vadd.xlane.f32.xlu0 %v427
    %v429 = vpop.xlane.xlu0 %428
    %v430 = vrcp.pop %v429
    %v431 = vmul.f32 %v426, %v430
    %432 = vrot.lane.b32.xlu0 %v166, 56
    %v433 = vpop.permute.xlu0 %432
    %v436 = vsel %vm181, %v431, 0
    %438 = vmatprep.subr.mxu0 0.0
    %439 = vmatpush1.msra.mxu0 0.0
    %440 = vmatprep.subr.mxu0 0.0
    %441 = vmatpush1.msra.mxu0 0.0
    %442 = vmatprep.subr.mxu0 0.0
    %443 = vmatpush1.msra.mxu0 0.0
    %444 = vmatprep.subr.mxu0 0.0
    %445 = vmatpush1.msra.mxu0 0.0
    %446 = vmatprep.subr.mxu0 0.0
    %447 = vmatpush1.msra.mxu0 0.0
    %448 = vmatprep.subr.mxu0 0.0
    %449 = vmatpush1.msra.mxu0 0.0
    %450 = vmatprep.subr.mxu0 0.0
    %451 = vmatpush1.msra.mxu0 0.0
    %452 = vmatprep.subr.mxu0 0.0
    %453 = vmatpush1.msra.mxu0 0.0
    %454 = vmatprep.subr.mxu0 0.0
    %455 = vmatpush1.msra.mxu0 0.0
    %456 = vmatprep.subr.mxu0 0.0
    %457 = vmatpush1.msra.mxu0 0.0
    %458 = vmatprep.subr.mxu0 0.0
    %459 = vmatpush1.msra.mxu0 0.0
    %460 = vmatprep.subr.mxu0 0.0
    %461 = vmatpush1.msra.mxu0 0.0
    %462 = vmatprep.subr.mxu0 0.0
    %463 = vmatpush1.msra.mxu0 0.0
    %464 = vmatprep.subr.mxu0 0.0
    %465 = vmatpush1.msra.mxu0 0.0
    %466 = vmatprep.subr.mxu0 0.0
    %467 = vmatpush1.msra.mxu0 0.0
    %468 = vmatprep.subr.mxu0 0.0
    %469 = vmatpush1.msra.mxu0 %v433
    %470 = vmatprep.subr.mxu0 0.0
    %471 = vmatpush2.msra.mxu0 0.0
    %472 = vmatprep.subr.mxu0 0.0
    %473 = vmatpush2.msra.mxu0 0.0
    %474 = vmatprep.subr.mxu0 0.0
    %475 = vmatpush2.msra.mxu0 0.0
    %476 = vmatprep.subr.mxu0 0.0
    %477 = vmatpush2.msra.mxu0 0.0
    %478 = vmatprep.subr.mxu0 0.0
    %479 = vmatpush2.msra.mxu0 0.0
    %480 = vmatprep.subr.mxu0 0.0
    %481 = vmatpush2.msra.mxu0 0.0
    %482 = vmatprep.subr.mxu0 0.0
    %483 = vmatpush2.msra.mxu0 0.0
    %484 = vmatprep.subr.mxu0 0.0
    %485 = vmatpush2.msra.mxu0 0.0
    %486 = vmatprep.subr.mxu0 0.0
    %487 = vmatpush2.msra.mxu0 0.0
    %488 = vmatprep.subr.mxu0 0.0
    %489 = vmatpush2.msra.mxu0 0.0
    %490 = vmatprep.subr.mxu0 0.0
    %491 = vmatpush2.msra.mxu0 0.0
    %492 = vmatprep.subr.mxu0 0.0
    %493 = vmatpush2.msra.mxu0 0.0
    %494 = vmatprep.subr.mxu0 0.0
    %495 = vmatpush2.msra.mxu0 0.0
    %496 = vmatprep.subr.mxu0 0.0
    %497 = vmatpush2.msra.mxu0 0.0
    %498 = vmatprep.subr.mxu0 0.0
    %499 = vmatpush2.msra.mxu0 0.0
    %500 = vmatprep.subr.mxu0 0.0
    %501 = vmatpush2.msra.mxu0 0.0
    %502 = vmatprep.mubr.f32.mxu0 0.0
    %503 = vmatmul.mubr.f32.gmra.mxu0 %v436
    %v504 = vpop.f32.mrf.mxu0
    %v505 = vadd.f32 0.0, %v504
    %v506 = vpop.f32.mrf.mxu0
    %507 = vdwg.mxu0
    %v509 = vsel %vm181, %v505, 0
    %511 = vmatprep.subr.mxu0 0.0
    %512 = vmatpush1.msra.mxu0 0.0
    %513 = vmatprep.subr.mxu0 0.0
    %514 = vmatpush1.msra.mxu0 0.0
    %515 = vmatprep.subr.mxu0 0.0
    %516 = vmatpush1.msra.mxu0 0.0
    %517 = vmatprep.subr.mxu0 0.0
    %518 = vmatpush1.msra.mxu0 0.0
    %519 = vmatprep.subr.mxu0 0.0
    %520 = vmatpush1.msra.mxu0 0.0
    %521 = vmatprep.subr.mxu0 0.0
    %522 = vmatpush1.msra.mxu0 0.0
    %523 = vmatprep.subr.mxu0 0.0
    %524 = vmatpush1.msra.mxu0 0.0
    %525 = vmatprep.subr.mxu0 0.0
    %526 = vmatpush1.msra.mxu0 0.0
    %527 = vmatprep.subr.mxu0 0.0
    %528 = vmatpush1.msra.mxu0 0.0
    %529 = vmatprep.subr.mxu0 0.0
    %530 = vmatpush1.msra.mxu0 0.0
    %531 = vmatprep.subr.mxu0 0.0
    %532 = vmatpush1.msra.mxu0 0.0
    %533 = vmatprep.subr.mxu0 0.0
    %534 = vmatpush1.msra.mxu0 0.0
    %535 = vmatprep.subr.mxu0 0.0
    %536 = vmatpush1.msra.mxu0 0.0
    %537 = vmatprep.subr.mxu0 0.0
    %538 = vmatpush1.msra.mxu0 0.0
    %539 = vmatprep.subr.mxu0 0.0
    %540 = vmatpush1.msra.mxu0 0.0
    %541 = vmatprep.subr.mxu0 0.0
    %542 = vmatpush1.msra.mxu0 %v175
    %543 = vmatprep.subr.mxu0 0.0
    %544 = vmatpush2.msra.mxu0 0.0
    %545 = vmatprep.subr.mxu0 0.0
    %546 = vmatpush2.msra.mxu0 0.0
    %547 = vmatprep.subr.mxu0 0.0
    %548 = vmatpush2.msra.mxu0 0.0
    %549 = vmatprep.subr.mxu0 0.0
    %550 = vmatpush2.msra.mxu0 0.0
    %551 = vmatprep.subr.mxu0 0.0
    %552 = vmatpush2.msra.mxu0 0.0
    %553 = vmatprep.subr.mxu0 0.0
    %554 = vmatpush2.msra.mxu0 0.0
    %555 = vmatprep.subr.mxu0 0.0
    %556 = vmatpush2.msra.mxu0 0.0
    %557 = vmatprep.subr.mxu0 0.0
    %558 = vmatpush2.msra.mxu0 0.0
    %559 = vmatprep.subr.mxu0 0.0
    %560 = vmatpush2.msra.mxu0 0.0
    %561 = vmatprep.subr.mxu0 0.0
    %562 = vmatpush2.msra.mxu0 0.0
    %563 = vmatprep.subr.mxu0 0.0
    %564 = vmatpush2.msra.mxu0 0.0
    %565 = vmatprep.subr.mxu0 0.0
    %566 = vmatpush2.msra.mxu0 0.0
    %567 = vmatprep.subr.mxu0 0.0
    %568 = vmatpush2.msra.mxu0 0.0
    %569 = vmatprep.subr.mxu0 0.0
    %570 = vmatpush2.msra.mxu0 0.0
    %571 = vmatprep.subr.mxu0 0.0
    %572 = vmatpush2.msra.mxu0 0.0
    %573 = vmatprep.subr.mxu0 0.0
    %574 = vmatpush2.msra.mxu0 0.0
    %575 = vmatprep.mubr.f32.mxu0 0.0
    %576 = vmatmul.mubr.f32.gmra.mxu0 %v509
    %v577 = vpop.f32.mrf.mxu0
    %v578 = vadd.f32 0.0, %v577
    %v579 = vpop.f32.mrf.mxu0
    %580 = vdwg.mxu0
    %v582 = vsel %vm181, %v340, 0
    %584 = vmatprep.subr.mxu0 0.0
    %585 = vmatpush1.msra.mxu0 0.0
    %586 = vmatprep.subr.mxu0 0.0
    %587 = vmatpush1.msra.mxu0 0.0
    %588 = vmatprep.subr.mxu0 0.0
    %589 = vmatpush1.msra.mxu0 0.0
    %590 = vmatprep.subr.mxu0 0.0
    %591 = vmatpush1.msra.mxu0 0.0
    %592 = vmatprep.subr.mxu0 0.0
    %593 = vmatpush1.msra.mxu0 0.0
    %594 = vmatprep.subr.mxu0 0.0
    %595 = vmatpush1.msra.mxu0 0.0
    %596 = vmatprep.subr.mxu0 0.0
    %597 = vmatpush1.msra.mxu0 0.0
    %598 = vmatprep.subr.mxu0 0.0
    %599 = vmatpush1.msra.mxu0 0.0
    %600 = vmatprep.subr.mxu0 0.0
    %601 = vmatpush1.msra.mxu0 0.0
    %602 = vmatprep.subr.mxu0 0.0
    %603 = vmatpush1.msra.mxu0 0.0
    %604 = vmatprep.subr.mxu0 0.0
    %605 = vmatpush1.msra.mxu0 0.0
    %606 = vmatprep.subr.mxu0 0.0
    %607 = vmatpush1.msra.mxu0 0.0
    %608 = vmatprep.subr.mxu0 0.0
    %609 = vmatpush1.msra.mxu0 0.0
    %610 = vmatprep.subr.mxu0 0.0
    %611 = vmatpush1.msra.mxu0 0.0
    %612 = vmatprep.subr.mxu0 0.0
    %613 = vmatpush1.msra.mxu0 0.0
    %614 = vmatprep.subr.mxu0 0.0
    %615 = vmatpush1.msra.mxu0 %v174
    %616 = vmatprep.subr.mxu0 0.0
    %617 = vmatpush2.msra.mxu0 0.0
    %618 = vmatprep.subr.mxu0 0.0
    %619 = vmatpush2.msra.mxu0 0.0
    %620 = vmatprep.subr.mxu0 0.0
    %621 = vmatpush2.msra.mxu0 0.0
    %622 = vmatprep.subr.mxu0 0.0
    %623 = vmatpush2.msra.mxu0 0.0
    %624 = vmatprep.subr.mxu0 0.0
    %625 = vmatpush2.msra.mxu0 0.0
    %626 = vmatprep.subr.mxu0 0.0
    %627 = vmatpush2.msra.mxu0 0.0
    %628 = vmatprep.subr.mxu0 0.0
    %629 = vmatpush2.msra.mxu0 0.0
    %630 = vmatprep.subr.mxu0 0.0
    %631 = vmatpush2.msra.mxu0 0.0
    %632 = vmatprep.subr.mxu0 0.0
    %633 = vmatpush2.msra.mxu0 0.0
    %634 = vmatprep.subr.mxu0 0.0
    %635 = vmatpush2.msra.mxu0 0.0
    %636 = vmatprep.subr.mxu0 0.0
    %637 = vmatpush2.msra.mxu0 0.0
    %638 = vmatprep.subr.mxu0 0.0
    %639 = vmatpush2.msra.mxu0 0.0
    %640 = vmatprep.subr.mxu0 0.0
    %641 = vmatpush2.msra.mxu0 0.0
    %642 = vmatprep.subr.mxu0 0.0
    %643 = vmatpush2.msra.mxu0 0.0
    %644 = vmatprep.subr.mxu0 0.0
    %645 = vmatpush2.msra.mxu0 0.0
    %646 = vmatprep.subr.mxu0 0.0
    %647 = vmatpush2.msra.mxu0 0.0
    %648 = vmatprep.mubr.f32.mxu0 0.0
    %649 = vmatmul.mubr.f32.gmra.mxu0 %v582
    %v650 = vpop.f32.mrf.mxu0
    %v651 = vadd.f32 %v578, %v650
    %v652 = vpop.f32.mrf.mxu0
    %653 = vdwg.mxu0
    %654 = vrot.lane.b32.xlu0 %v166, 112
    %v655 = vpop.permute.xlu0 %654
    %656 = vrot.lane.b32.xlu0 %v166, 80
    %v657 = vpop.permute.xlu0 %656
    %v658 = vsel %vm181, %v655, 0
    %v660 = vsel %vm181, %v657, 0
    %662 = vmatprep.subr.mxu0 0.0
    %663 = vmatpush1.xpose.msra.mxu0 0.0
    %664 = vmatprep.subr.mxu0 0.0
    %665 = vmatpush1.xpose.msra.mxu0 0.0
    %666 = vmatprep.subr.mxu0 0.0
    %667 = vmatpush1.xpose.msra.mxu0 0.0
    %668 = vmatprep.subr.mxu0 0.0
    %669 = vmatpush1.xpose.msra.mxu0 0.0
    %670 = vmatprep.subr.mxu0 0.0
    %671 = vmatpush1.xpose.msra.mxu0 0.0
    %672 = vmatprep.subr.mxu0 0.0
    %673 = vmatpush1.xpose.msra.mxu0 0.0
    %674 = vmatprep.subr.mxu0 0.0
    %675 = vmatpush1.xpose.msra.mxu0 0.0
    %676 = vmatprep.subr.mxu0 0.0
    %677 = vmatpush1.xpose.msra.mxu0 0.0
    %678 = vmatprep.subr.mxu0 0.0
    %679 = vmatpush1.xpose.msra.mxu0 0.0
    %680 = vmatprep.subr.mxu0 0.0
    %681 = vmatpush1.xpose.msra.mxu0 0.0
    %682 = vmatprep.subr.mxu0 0.0
    %683 = vmatpush1.xpose.msra.mxu0 0.0
    %684 = vmatprep.subr.mxu0 0.0
    %685 = vmatpush1.xpose.msra.mxu0 0.0
    %686 = vmatprep.subr.mxu0 0.0
    %687 = vmatpush1.xpose.msra.mxu0 0.0
    %688 = vmatprep.subr.mxu0 0.0
    %689 = vmatpush1.xpose.msra.mxu0 0.0
    %690 = vmatprep.subr.mxu0 0.0
    %691 = vmatpush1.xpose.msra.mxu0 0.0
    %692 = vmatprep.subr.mxu0 0.0
    %693 = vmatpush1.xpose.msra.mxu0 %v660
    %694 = vmatprep.subr.mxu0 0.0
    %695 = vmatpush2.xpose.msra.mxu0 0.0
    %696 = vmatprep.subr.mxu0 0.0
    %697 = vmatpush2.xpose.msra.mxu0 0.0
    %698 = vmatprep.subr.mxu0 0.0
    %699 = vmatpush2.xpose.msra.mxu0 0.0
    %700 = vmatprep.subr.mxu0 0.0
    %701 = vmatpush2.xpose.msra.mxu0 0.0
    %702 = vmatprep.subr.mxu0 0.0
    %703 = vmatpush2.xpose.msra.mxu0 0.0
    %704 = vmatprep.subr.mxu0 0.0
    %705 = vmatpush2.xpose.msra.mxu0 0.0
    %706 = vmatprep.subr.mxu0 0.0
    %707 = vmatpush2.xpose.msra.mxu0 0.0
    %708 = vmatprep.subr.mxu0 0.0
    %709 = vmatpush2.xpose.msra.mxu0 0.0
    %710 = vmatprep.subr.mxu0 0.0
    %711 = vmatpush2.xpose.msra.mxu0 0.0
    %712 = vmatprep.subr.mxu0 0.0
    %713 = vmatpush2.xpose.msra.mxu0 0.0
    %714 = vmatprep.subr.mxu0 0.0
    %715 = vmatpush2.xpose.msra.mxu0 0.0
    %716 = vmatprep.subr.mxu0 0.0
    %717 = vmatpush2.xpose.msra.mxu0 0.0
    %718 = vmatprep.subr.mxu0 0.0
    %719 = vmatpush2.xpose.msra.mxu0 0.0
    %720 = vmatprep.subr.mxu0 0.0
    %721 = vmatpush2.xpose.msra.mxu0 0.0
    %722 = vmatprep.subr.mxu0 0.0
    %723 = vmatpush2.xpose.msra.mxu0 0.0
    %724 = vmatprep.subr.mxu0 0.0
    %725 = vmatpush2.xpose.msra.mxu0 0.0
    %726 = vmatprep.mubr.f32.mxu0 0.0
    %727 = vmatmul.mubr.f32.gmra.mxu0 %v658
    %v728 = vpop.f32.mrf.mxu0
    %v729 = vadd.f32 0.0, %v728
    %v730 = vpop.f32.mrf.mxu0
    %731 = vdwg.mxu0
    %v732 = vsel %vm181, %v729, -inf
    %733 = vmax.xlane.f32.xlu0 %v732
    %v734 = vpop.xlane.xlu0 %733
    %v735 = vsub.f32 %v729, %v734
    %v736 = vmul.f32 %v735, 1.442695
    %v737 = vpow.pop %v736
    %v738 = vsel %vm181, %v737, 0.0
    %739 = vadd.xlane.f32.xlu0 %v738
    %v740 = vpop.xlane.xlu0 %739
    %v741 = vrcp.pop %v740
    %v742 = vmul.f32 %v737, %v741
    %743 = vrot.lane.b32.xlu0 %v166, 48
    %v744 = vpop.permute.xlu0 %743
    %v747 = vsel %vm181, %v742, 0
    %749 = vmatprep.subr.mxu0 0.0
    %750 = vmatpush1.msra.mxu0 0.0
    %751 = vmatprep.subr.mxu0 0.0
    %752 = vmatpush1.msra.mxu0 0.0
    %753 = vmatprep.subr.mxu0 0.0
    %754 = vmatpush1.msra.mxu0 0.0
    %755 = vmatprep.subr.mxu0 0.0
    %756 = vmatpush1.msra.mxu0 0.0
    %757 = vmatprep.subr.mxu0 0.0
    %758 = vmatpush1.msra.mxu0 0.0
    %759 = vmatprep.subr.mxu0 0.0
    %760 = vmatpush1.msra.mxu0 0.0
    %761 = vmatprep.subr.mxu0 0.0
    %762 = vmatpush1.msra.mxu0 0.0
    %763 = vmatprep.subr.mxu0 0.0
    %764 = vmatpush1.msra.mxu0 0.0
    %765 = vmatprep.subr.mxu0 0.0
    %766 = vmatpush1.msra.mxu0 0.0
    %767 = vmatprep.subr.mxu0 0.0
    %768 = vmatpush1.msra.mxu0 0.0
    %769 = vmatprep.subr.mxu0 0.0
    %770 = vmatpush1.msra.mxu0 0.0
    %771 = vmatprep.subr.mxu0 0.0
    %772 = vmatpush1.msra.mxu0 0.0
    %773 = vmatprep.subr.mxu0 0.0
    %774 = vmatpush1.msra.mxu0 0.0
    %775 = vmatprep.subr.mxu0 0.0
    %776 = vmatpush1.msra.mxu0 0.0
    %777 = vmatprep.subr.mxu0 0.0
    %778 = vmatpush1.msra.mxu0 0.0
    %779 = vmatprep.subr.mxu0 0.0
    %780 = vmatpush1.msra.mxu0 %v744
    %781 = vmatprep.subr.mxu0 0.0
    %782 = vmatpush2.msra.mxu0 0.0
    %783 = vmatprep.subr.mxu0 0.0
    %784 = vmatpush2.msra.mxu0 0.0
    %785 = vmatprep.subr.mxu0 0.0
    %786 = vmatpush2.msra.mxu0 0.0
    %787 = vmatprep.subr.mxu0 0.0
    %788 = vmatpush2.msra.mxu0 0.0
    %789 = vmatprep.subr.mxu0 0.0
    %790 = vmatpush2.msra.mxu0 0.0
    %791 = vmatprep.subr.mxu0 0.0
    %792 = vmatpush2.msra.mxu0 0.0
    %793 = vmatprep.subr.mxu0 0.0
    %794 = vmatpush2.msra.mxu0 0.0
    %795 = vmatprep.subr.mxu0 0.0
    %796 = vmatpush2.msra.mxu0 0.0
    %797 = vmatprep.subr.mxu0 0.0
    %798 = vmatpush2.msra.mxu0 0.0
    %799 = vmatprep.subr.mxu0 0.0
    %800 = vmatpush2.msra.mxu0 0.0
    %801 = vmatprep.subr.mxu0 0.0
    %802 = vmatpush2.msra.mxu0 0.0
    %803 = vmatprep.subr.mxu0 0.0
    %804 = vmatpush2.msra.mxu0 0.0
    %805 = vmatprep.subr.mxu0 0.0
    %806 = vmatpush2.msra.mxu0 0.0
    %807 = vmatprep.subr.mxu0 0.0
    %808 = vmatpush2.msra.mxu0 0.0
    %809 = vmatprep.subr.mxu0 0.0
    %810 = vmatpush2.msra.mxu0 0.0
    %811 = vmatprep.subr.mxu0 0.0
    %812 = vmatpush2.msra.mxu0 0.0
    %813 = vmatprep.mubr.f32.mxu0 0.0
    %814 = vmatmul.mubr.f32.gmra.mxu0 %v747
    %v815 = vpop.f32.mrf.mxu0
    %v816 = vadd.f32 0.0, %v815
    %v817 = vpop.f32.mrf.mxu0
    %818 = vdwg.mxu0
    %v820 = vsel %vm181, %v816, 0
    %822 = vmatprep.subr.mxu0 0.0
    %823 = vmatpush1.msra.mxu0 0.0
    %824 = vmatprep.subr.mxu0 0.0
    %825 = vmatpush1.msra.mxu0 0.0
    %826 = vmatprep.subr.mxu0 0.0
    %827 = vmatpush1.msra.mxu0 0.0
    %828 = vmatprep.subr.mxu0 0.0
    %829 = vmatpush1.msra.mxu0 0.0
    %830 = vmatprep.subr.mxu0 0.0
    %831 = vmatpush1.msra.mxu0 0.0
    %832 = vmatprep.subr.mxu0 0.0
    %833 = vmatpush1.msra.mxu0 0.0
    %834 = vmatprep.subr.mxu0 0.0
    %835 = vmatpush1.msra.mxu0 0.0
    %836 = vmatprep.subr.mxu0 0.0
    %837 = vmatpush1.msra.mxu0 0.0
    %838 = vmatprep.subr.mxu0 0.0
    %839 = vmatpush1.msra.mxu0 0.0
    %840 = vmatprep.subr.mxu0 0.0
    %841 = vmatpush1.msra.mxu0 0.0
    %842 = vmatprep.subr.mxu0 0.0
    %843 = vmatpush1.msra.mxu0 0.0
    %844 = vmatprep.subr.mxu0 0.0
    %845 = vmatpush1.msra.mxu0 0.0
    %846 = vmatprep.subr.mxu0 0.0
    %847 = vmatpush1.msra.mxu0 0.0
    %848 = vmatprep.subr.mxu0 0.0
    %849 = vmatpush1.msra.mxu0 0.0
    %850 = vmatprep.subr.mxu0 0.0
    %851 = vmatpush1.msra.mxu0 0.0
    %852 = vmatprep.subr.mxu0 0.0
    %853 = vmatpush1.msra.mxu0 %v176
    %854 = vmatprep.subr.mxu0 0.0
    %855 = vmatpush2.msra.mxu0 0.0
    %856 = vmatprep.subr.mxu0 0.0
    %857 = vmatpush2.msra.mxu0 0.0
    %858 = vmatprep.subr.mxu0 0.0
    %859 = vmatpush2.msra.mxu0 0.0
    %860 = vmatprep.subr.mxu0 0.0
    %861 = vmatpush2.msra.mxu0 0.0
    %862 = vmatprep.subr.mxu0 0.0
    %863 = vmatpush2.msra.mxu0 0.0
    %864 = vmatprep.subr.mxu0 0.0
    %865 = vmatpush2.msra.mxu0 0.0
    %866 = vmatprep.subr.mxu0 0.0
    %867 = vmatpush2.msra.mxu0 0.0
    %868 = vmatprep.subr.mxu0 0.0
    %869 = vmatpush2.msra.mxu0 0.0
    %870 = vmatprep.subr.mxu0 0.0
    %871 = vmatpush2.msra.mxu0 0.0
    %872 = vmatprep.subr.mxu0 0.0
    %873 = vmatpush2.msra.mxu0 0.0
    %874 = vmatprep.subr.mxu0 0.0
    %875 = vmatpush2.msra.mxu0 0.0
    %876 = vmatprep.subr.mxu0 0.0
    %877 = vmatpush2.msra.mxu0 0.0
    %878 = vmatprep.subr.mxu0 0.0
    %879 = vmatpush2.msra.mxu0 0.0
    %880 = vmatprep.subr.mxu0 0.0
    %881 = vmatpush2.msra.mxu0 0.0
    %882 = vmatprep.subr.mxu0 0.0
    %883 = vmatpush2.msra.mxu0 0.0
    %884 = vmatprep.subr.mxu0 0.0
    %885 = vmatpush2.msra.mxu0 0.0
    %886 = vmatprep.mubr.f32.mxu0 0.0
    %887 = vmatmul.mubr.f32.gmra.mxu0 %v820
    %v888 = vpop.f32.mrf.mxu0
    %v889 = vadd.f32 0.0, %v888
    %v890 = vpop.f32.mrf.mxu0
    %891 = vdwg.mxu0
    %v892 = vadd.f32 %v651, %v889
    %893 = vrot.lane.b32.xlu0 %v166, 104
    %v894 = vpop.permute.xlu0 %893
    %895 = vrot.lane.b32.xlu0 %v166, 72
    %v896 = vpop.permute.xlu0 %895
    %v897 = vsel %vm181, %v894, 0
    %v899 = vsel %vm181, %v896, 0
    %901 = vmatprep.subr.mxu0 0.0
    %902 = vmatpush1.xpose.msra.mxu0 0.0
    %903 = vmatprep.subr.mxu0 0.0
    %904 = vmatpush1.xpose.msra.mxu0 0.0
    %905 = vmatprep.subr.mxu0 0.0
    %906 = vmatpush1.xpose.msra.mxu0 0.0
    %907 = vmatprep.subr.mxu0 0.0
    %908 = vmatpush1.xpose.msra.mxu0 0.0
    %909 = vmatprep.subr.mxu0 0.0
    %910 = vmatpush1.xpose.msra.mxu0 0.0
    %911 = vmatprep.subr.mxu0 0.0
    %912 = vmatpush1.xpose.msra.mxu0 0.0
    %913 = vmatprep.subr.mxu0 0.0
    %914 = vmatpush1.xpose.msra.mxu0 0.0
    %915 = vmatprep.subr.mxu0 0.0
    %916 = vmatpush1.xpose.msra.mxu0 0.0
    %917 = vmatprep.subr.mxu0 0.0
    %918 = vmatpush1.xpose.msra.mxu0 0.0
    %919 = vmatprep.subr.mxu0 0.0
    %920 = vmatpush1.xpose.msra.mxu0 0.0
    %921 = vmatprep.subr.mxu0 0.0
    %922 = vmatpush1.xpose.msra.mxu0 0.0
    %923 = vmatprep.subr.mxu0 0.0
    %924 = vmatpush1.xpose.msra.mxu0 0.0
    %925 = vmatprep.subr.mxu0 0.0
    %926 = vmatpush1.xpose.msra.mxu0 0.0
    %927 = vmatprep.subr.mxu0 0.0
    %928 = vmatpush1.xpose.msra.mxu0 0.0
    %929 = vmatprep.subr.mxu0 0.0
    %930 = vmatpush1.xpose.msra.mxu0 0.0
    %931 = vmatprep.subr.mxu0 0.0
    %932 = vmatpush1.xpose.msra.mxu0 %v899
    %933 = vmatprep.subr.mxu0 0.0
    %934 = vmatpush2.xpose.msra.mxu0 0.0
    %935 = vmatprep.subr.mxu0 0.0
    %936 = vmatpush2.xpose.msra.mxu0 0.0
    %937 = vmatprep.subr.mxu0 0.0
    %938 = vmatpush2.xpose.msra.mxu0 0.0
    %939 = vmatprep.subr.mxu0 0.0
    %940 = vmatpush2.xpose.msra.mxu0 0.0
    %941 = vmatprep.subr.mxu0 0.0
    %942 = vmatpush2.xpose.msra.mxu0 0.0
    %943 = vmatprep.subr.mxu0 0.0
    %944 = vmatpush2.xpose.msra.mxu0 0.0
    %945 = vmatprep.subr.mxu0 0.0
    %946 = vmatpush2.xpose.msra.mxu0 0.0
    %947 = vmatprep.subr.mxu0 0.0
    %948 = vmatpush2.xpose.msra.mxu0 0.0
    %949 = vmatprep.subr.mxu0 0.0
    %950 = vmatpush2.xpose.msra.mxu0 0.0
    %951 = vmatprep.subr.mxu0 0.0
    %952 = vmatpush2.xpose.msra.mxu0 0.0
    %953 = vmatprep.subr.mxu0 0.0
    %954 = vmatpush2.xpose.msra.mxu0 0.0
    %955 = vmatprep.subr.mxu0 0.0
    %956 = vmatpush2.xpose.msra.mxu0 0.0
    %957 = vmatprep.subr.mxu0 0.0
    %958 = vmatpush2.xpose.msra.mxu0 0.0
    %959 = vmatprep.subr.mxu0 0.0
    %960 = vmatpush2.xpose.msra.mxu0 0.0
    %961 = vmatprep.subr.mxu0 0.0
    %962 = vmatpush2.xpose.msra.mxu0 0.0
    %963 = vmatprep.subr.mxu0 0.0
    %964 = vmatpush2.xpose.msra.mxu0 0.0
    %965 = vmatprep.mubr.f32.mxu0 0.0
    %966 = vmatmul.mubr.f32.gmra.mxu0 %v897
    %v967 = vpop.f32.mrf.mxu0
    %v968 = vadd.f32 0.0, %v967
    %v969 = vpop.f32.mrf.mxu0
    %970 = vdwg.mxu0
    %v971 = vsel %vm181, %v968, -inf
    %972 = vmax.xlane.f32.xlu0 %v971
    %v973 = vpop.xlane.xlu0 %972
    %v974 = vsub.f32 %v968, %v973
    %v975 = vmul.f32 %v974, 1.442695
    %v976 = vpow.pop %v975
    %v977 = vsel %vm181, %v976, 0.0
    %978 = vadd.xlane.f32.xlu0 %v977
    %v979 = vpop.xlane.xlu0 %978
    %v980 = vrcp.pop %v979
    %v981 = vmul.f32 %v976, %v980
    %982 = vrot.lane.b32.xlu0 %v166, 40
    %v983 = vpop.permute.xlu0 %982
    %v986 = vsel %vm181, %v981, 0
    %988 = vmatprep.subr.mxu0 0.0
    %989 = vmatpush1.msra.mxu0 0.0
    %990 = vmatprep.subr.mxu0 0.0
    %991 = vmatpush1.msra.mxu0 0.0
    %992 = vmatprep.subr.mxu0 0.0
    %993 = vmatpush1.msra.mxu0 0.0
    %994 = vmatprep.subr.mxu0 0.0
    %995 = vmatpush1.msra.mxu0 0.0
    %996 = vmatprep.subr.mxu0 0.0
    %997 = vmatpush1.msra.mxu0 0.0
    %998 = vmatprep.subr.mxu0 0.0
    %999 = vmatpush1.msra.mxu0 0.0
    %1000 = vmatprep.subr.mxu0 0.0
    %1001 = vmatpush1.msra.mxu0 0.0
    %1002 = vmatprep.subr.mxu0 0.0
    %1003 = vmatpush1.msra.mxu0 0.0
    %1004 = vmatprep.subr.mxu0 0.0
    %1005 = vmatpush1.msra.mxu0 0.0
    %1006 = vmatprep.subr.mxu0 0.0
    %1007 = vmatpush1.msra.mxu0 0.0
    %1008 = vmatprep.subr.mxu0 0.0
    %1009 = vmatpush1.msra.mxu0 0.0
    %1010 = vmatprep.subr.mxu0 0.0
    %1011 = vmatpush1.msra.mxu0 0.0
    %1012 = vmatprep.subr.mxu0 0.0
    %1013 = vmatpush1.msra.mxu0 0.0
    %1014 = vmatprep.subr.mxu0 0.0
    %1015 = vmatpush1.msra.mxu0 0.0
    %1016 = vmatprep.subr.mxu0 0.0
    %1017 = vmatpush1.msra.mxu0 0.0
    %1018 = vmatprep.subr.mxu0 0.0
    %1019 = vmatpush1.msra.mxu0 %v983
    %1020 = vmatprep.subr.mxu0 0.0
    %1021 = vmatpush2.msra.mxu0 0.0
    %1022 = vmatprep.subr.mxu0 0.0
    %1023 = vmatpush2.msra.mxu0 0.0
    %1024 = vmatprep.subr.mxu0 0.0
    %1025 = vmatpush2.msra.mxu0 0.0
    %1026 = vmatprep.subr.mxu0 0.0
    %1027 = vmatpush2.msra.mxu0 0.0
    %1028 = vmatprep.subr.mxu0 0.0
    %1029 = vmatpush2.msra.mxu0 0.0
    %1030 = vmatprep.subr.mxu0 0.0
    %1031 = vmatpush2.msra.mxu0 0.0
    %1032 = vmatprep.subr.mxu0 0.0
    %1033 = vmatpush2.msra.mxu0 0.0
    %1034 = vmatprep.subr.mxu0 0.0
    %1035 = vmatpush2.msra.mxu0 0.0
    %1036 = vmatprep.subr.mxu0 0.0
    %1037 = vmatpush2.msra.mxu0 0.0
    %1038 = vmatprep.subr.mxu0 0.0
    %1039 = vmatpush2.msra.mxu0 0.0
    %1040 = vmatprep.subr.mxu0 0.0
    %1041 = vmatpush2.msra.mxu0 0.0
    %1042 = vmatprep.subr.mxu0 0.0
    %1043 = vmatpush2.msra.mxu0 0.0
    %1044 = vmatprep.subr.mxu0 0.0
    %1045 = vmatpush2.msra.mxu0 0.0
    %1046 = vmatprep.subr.mxu0 0.0
    %1047 = vmatpush2.msra.mxu0 0.0
    %1048 = vmatprep.subr.mxu0 0.0
    %1049 = vmatpush2.msra.mxu0 0.0
    %1050 = vmatprep.subr.mxu0 0.0
    %1051 = vmatpush2.msra.mxu0 0.0
    %1052 = vmatprep.mubr.f32.mxu0 0.0
    %1053 = vmatmul.mubr.f32.gmra.mxu0 %v986
    %v1054 = vpop.f32.mrf.mxu0
    %v1055 = vadd.f32 0.0, %v1054
    %v1056 = vpop.f32.mrf.mxu0
    %1057 = vdwg.mxu0
    %v1059 = vsel %vm181, %v1055, 0
    %1061 = vmatprep.subr.mxu0 0.0
    %1062 = vmatpush1.msra.mxu0 0.0
    %1063 = vmatprep.subr.mxu0 0.0
    %1064 = vmatpush1.msra.mxu0 0.0
    %1065 = vmatprep.subr.mxu0 0.0
    %1066 = vmatpush1.msra.mxu0 0.0
    %1067 = vmatprep.subr.mxu0 0.0
    %1068 = vmatpush1.msra.mxu0 0.0
    %1069 = vmatprep.subr.mxu0 0.0
    %1070 = vmatpush1.msra.mxu0 0.0
    %1071 = vmatprep.subr.mxu0 0.0
    %1072 = vmatpush1.msra.mxu0 0.0
    %1073 = vmatprep.subr.mxu0 0.0
    %1074 = vmatpush1.msra.mxu0 0.0
    %1075 = vmatprep.subr.mxu0 0.0
    %1076 = vmatpush1.msra.mxu0 0.0
    %1077 = vmatprep.subr.mxu0 0.0
    %1078 = vmatpush1.msra.mxu0 0.0
    %1079 = vmatprep.subr.mxu0 0.0
    %1080 = vmatpush1.msra.mxu0 0.0
    %1081 = vmatprep.subr.mxu0 0.0
    %1082 = vmatpush1.msra.mxu0 0.0
    %1083 = vmatprep.subr.mxu0 0.0
    %1084 = vmatpush1.msra.mxu0 0.0
    %1085 = vmatprep.subr.mxu0 0.0
    %1086 = vmatpush1.msra.mxu0 0.0
    %1087 = vmatprep.subr.mxu0 0.0
    %1088 = vmatpush1.msra.mxu0 0.0
    %1089 = vmatprep.subr.mxu0 0.0
    %1090 = vmatpush1.msra.mxu0 0.0
    %1091 = vmatprep.subr.mxu0 0.0
    %1092 = vmatpush1.msra.mxu0 %v177
    %1093 = vmatprep.subr.mxu0 0.0
    %1094 = vmatpush2.msra.mxu0 0.0
    %1095 = vmatprep.subr.mxu0 0.0
    %1096 = vmatpush2.msra.mxu0 0.0
    %1097 = vmatprep.subr.mxu0 0.0
    %1098 = vmatpush2.msra.mxu0 0.0
    %1099 = vmatprep.subr.mxu0 0.0
    %1100 = vmatpush2.msra.mxu0 0.0
    %1101 = vmatprep.subr.mxu0 0.0
    %1102 = vmatpush2.msra.mxu0 0.0
    %1103 = vmatprep.subr.mxu0 0.0
    %1104 = vmatpush2.msra.mxu0 0.0
    %1105 = vmatprep.subr.mxu0 0.0
    %1106 = vmatpush2.msra.mxu0 0.0
    %1107 = vmatprep.subr.mxu0 0.0
    %1108 = vmatpush2.msra.mxu0 0.0
    %1109 = vmatprep.subr.mxu0 0.0
    %1110 = vmatpush2.msra.mxu0 0.0
    %1111 = vmatprep.subr.mxu0 0.0
    %1112 = vmatpush2.msra.mxu0 0.0
    %1113 = vmatprep.subr.mxu0 0.0
    %1114 = vmatpush2.msra.mxu0 0.0
    %1115 = vmatprep.subr.mxu0 0.0
    %1116 = vmatpush2.msra.mxu0 0.0
    %1117 = vmatprep.subr.mxu0 0.0
    %1118 = vmatpush2.msra.mxu0 0.0
    %1119 = vmatprep.subr.mxu0 0.0
    %1120 = vmatpush2.msra.mxu0 0.0
    %1121 = vmatprep.subr.mxu0 0.0
    %1122 = vmatpush2.msra.mxu0 0.0
    %1123 = vmatprep.subr.mxu0 0.0
    %1124 = vmatpush2.msra.mxu0 0.0
    %1125 = vmatprep.mubr.f32.mxu0 0.0
    %1126 = vmatmul.mubr.f32.gmra.mxu0 %v1059
    %v1127 = vpop.f32.mrf.mxu0
    %v1128 = vadd.f32 0.0, %v1127
    %v1129 = vpop.f32.mrf.mxu0
    %1130 = vdwg.mxu0
    %v1131 = vadd.f32 %v892, %v1128
    %1132 = vst.msk [vmem:[#allocation2] sm:$0xff] %vm92, %v1131
    %1134 = vrot.lane.b32.xlu0 %v171, 96
    %v1135 = vpop.permute.xlu0 %1134
    %v1136 = vsel %vm181, %v171, 0
    %v1138 = vsel %vm181, %v1135, 0
    %1140 = vmatprep.subr.mxu0 0.0
    %1141 = vmatpush1.xpose.msra.mxu0 0.0
    %1142 = vmatprep.subr.mxu0 0.0
    %1143 = vmatpush1.xpose.msra.mxu0 0.0
    %1144 = vmatprep.subr.mxu0 0.0
    %1145 = vmatpush1.xpose.msra.mxu0 0.0
    %1146 = vmatprep.subr.mxu0 0.0
    %1147 = vmatpush1.xpose.msra.mxu0 0.0
    %1148 = vmatprep.subr.mxu0 0.0
    %1149 = vmatpush1.xpose.msra.mxu0 0.0
    %1150 = vmatprep.subr.mxu0 0.0
    %1151 = vmatpush1.xpose.msra.mxu0 0.0
    %1152 = vmatprep.subr.mxu0 0.0
    %1153 = vmatpush1.xpose.msra.mxu0 0.0
    %1154 = vmatprep.subr.mxu0 0.0
    %1155 = vmatpush1.xpose.msra.mxu0 0.0
    %1156 = vmatprep.subr.mxu0 0.0
    %1157 = vmatpush1.xpose.msra.mxu0 0.0
    %1158 = vmatprep.subr.mxu0 0.0
    %1159 = vmatpush1.xpose.msra.mxu0 0.0
    %1160 = vmatprep.subr.mxu0 0.0
    %1161 = vmatpush1.xpose.msra.mxu0 0.0
    %1162 = vmatprep.subr.mxu0 0.0
    %1163 = vmatpush1.xpose.msra.mxu0 0.0
    %1164 = vmatprep.subr.mxu0 0.0
    %1165 = vmatpush1.xpose.msra.mxu0 0.0
    %1166 = vmatprep.subr.mxu0 0.0
    %1167 = vmatpush1.xpose.msra.mxu0 0.0
    %1168 = vmatprep.subr.mxu0 0.0
    %1169 = vmatpush1.xpose.msra.mxu0 0.0
    %1170 = vmatprep.subr.mxu0 0.0
    %1171 = vmatpush1.xpose.msra.mxu0 %v1138
    %1172 = vmatprep.subr.mxu0 0.0
    %1173 = vmatpush2.xpose.msra.mxu0 0.0
    %1174 = vmatprep.subr.mxu0 0.0
    %1175 = vmatpush2.xpose.msra.mxu0 0.0
    %1176 = vmatprep.subr.mxu0 0.0
    %1177 = vmatpush2.xpose.msra.mxu0 0.0
    %1178 = vmatprep.subr.mxu0 0.0
    %1179 = vmatpush2.xpose.msra.mxu0 0.0
    %1180 = vmatprep.subr.mxu0 0.0
    %1181 = vmatpush2.xpose.msra.mxu0 0.0
    %1182 = vmatprep.subr.mxu0 0.0
    %1183 = vmatpush2.xpose.msra.mxu0 0.0
    %1184 = vmatprep.subr.mxu0 0.0
    %1185 = vmatpush2.xpose.msra.mxu0 0.0
    %1186 = vmatprep.subr.mxu0 0.0
    %1187 = vmatpush2.xpose.msra.mxu0 0.0
    %1188 = vmatprep.subr.mxu0 0.0
    %1189 = vmatpush2.xpose.msra.mxu0 0.0
    %1190 = vmatprep.subr.mxu0 0.0
    %1191 = vmatpush2.xpose.msra.mxu0 0.0
    %1192 = vmatprep.subr.mxu0 0.0
    %1193 = vmatpush2.xpose.msra.mxu0 0.0
    %1194 = vmatprep.subr.mxu0 0.0
    %1195 = vmatpush2.xpose.msra.mxu0 0.0
    %1196 = vmatprep.subr.mxu0 0.0
    %1197 = vmatpush2.xpose.msra.mxu0 0.0
    %1198 = vmatprep.subr.mxu0 0.0
    %1199 = vmatpush2.xpose.msra.mxu0 0.0
    %1200 = vmatprep.subr.mxu0 0.0
    %1201 = vmatpush2.xpose.msra.mxu0 0.0
    %1202 = vmatprep.subr.mxu0 0.0
    %1203 = vmatpush2.xpose.msra.mxu0 0.0
    %1204 = vmatprep.mubr.f32.mxu0 0.0
    %1205 = vmatmul.mubr.f32.gmra.mxu0 %v1136
    %v1206 = vpop.f32.mrf.mxu0
    %v1207 = vadd.f32 0.0, %v1206
    %v1208 = vpop.f32.mrf.mxu0
    %1209 = vdwg.mxu0
    %v1210 = vsel %vm181, %v1207, -inf
    %1211 = vmax.xlane.f32.xlu0 %v1210
    %v1212 = vpop.xlane.xlu0 %1211
    %v1213 = vsub.f32 %v1207, %v1212
    %v1214 = vmul.f32 %v1213, 1.442695
    %v1215 = vpow.pop %v1214
    %v1216 = vsel %vm181, %v1215, 0.0
    %1217 = vadd.xlane.f32.xlu0 %v1216
    %v1218 = vpop.xlane.xlu0 %1217
    %v1219 = vrcp.pop %v1218
    %v1220 = vmul.f32 %v1215, %v1219
    %1221 = vrot.lane.b32.xlu0 %v171, 64
    %v1222 = vpop.permute.xlu0 %1221
    %v1225 = vsel %vm181, %v1220, 0
    %1227 = vmatprep.subr.mxu0 0.0
    %1228 = vmatpush1.msra.mxu0 0.0
    %1229 = vmatprep.subr.mxu0 0.0
    %1230 = vmatpush1.msra.mxu0 0.0
    %1231 = vmatprep.subr.mxu0 0.0
    %1232 = vmatpush1.msra.mxu0 0.0
    %1233 = vmatprep.subr.mxu0 0.0
    %1234 = vmatpush1.msra.mxu0 0.0
    %1235 = vmatprep.subr.mxu0 0.0
    %1236 = vmatpush1.msra.mxu0 0.0
    %1237 = vmatprep.subr.mxu0 0.0
    %1238 = vmatpush1.msra.mxu0 0.0
    %1239 = vmatprep.subr.mxu0 0.0
    %1240 = vmatpush1.msra.mxu0 0.0
    %1241 = vmatprep.subr.mxu0 0.0
    %1242 = vmatpush1.msra.mxu0 0.0
    %1243 = vmatprep.subr.mxu0 0.0
    %1244 = vmatpush1.msra.mxu0 0.0
    %1245 = vmatprep.subr.mxu0 0.0
    %1246 = vmatpush1.msra.mxu0 0.0
    %1247 = vmatprep.subr.mxu0 0.0
    %1248 = vmatpush1.msra.mxu0 0.0
    %1249 = vmatprep.subr.mxu0 0.0
    %1250 = vmatpush1.msra.mxu0 0.0
    %1251 = vmatprep.subr.mxu0 0.0
    %1252 = vmatpush1.msra.mxu0 0.0
    %1253 = vmatprep.subr.mxu0 0.0
    %1254 = vmatpush1.msra.mxu0 0.0
    %1255 = vmatprep.subr.mxu0 0.0
    %1256 = vmatpush1.msra.mxu0 0.0
    %1257 = vmatprep.subr.mxu0 0.0
    %1258 = vmatpush1.msra.mxu0 %v1222
    %1259 = vmatprep.subr.mxu0 0.0
    %1260 = vmatpush2.msra.mxu0 0.0
    %1261 = vmatprep.subr.mxu0 0.0
    %1262 = vmatpush2.msra.mxu0 0.0
    %1263 = vmatprep.subr.mxu0 0.0
    %1264 = vmatpush2.msra.mxu0 0.0
    %1265 = vmatprep.subr.mxu0 0.0
    %1266 = vmatpush2.msra.mxu0 0.0
    %1267 = vmatprep.subr.mxu0 0.0
    %1268 = vmatpush2.msra.mxu0 0.0
    %1269 = vmatprep.subr.mxu0 0.0
    %1270 = vmatpush2.msra.mxu0 0.0
    %1271 = vmatprep.subr.mxu0 0.0
    %1272 = vmatpush2.msra.mxu0 0.0
    %1273 = vmatprep.subr.mxu0 0.0
    %1274 = vmatpush2.msra.mxu0 0.0
    %1275 = vmatprep.subr.mxu0 0.0
    %1276 = vmatpush2.msra.mxu0 0.0
    %1277 = vmatprep.subr.mxu0 0.0
    %1278 = vmatpush2.msra.mxu0 0.0
    %1279 = vmatprep.subr.mxu0 0.0
    %1280 = vmatpush2.msra.mxu0 0.0
    %1281 = vmatprep.subr.mxu0 0.0
    %1282 = vmatpush2.msra.mxu0 0.0
    %1283 = vmatprep.subr.mxu0 0.0
    %1284 = vmatpush2.msra.mxu0 0.0
    %1285 = vmatprep.subr.mxu0 0.0
    %1286 = vmatpush2.msra.mxu0 0.0
    %1287 = vmatprep.subr.mxu0 0.0
    %1288 = vmatpush2.msra.mxu0 0.0
    %1289 = vmatprep.subr.mxu0 0.0
    %1290 = vmatpush2.msra.mxu0 0.0
    %1291 = vmatprep.mubr.f32.mxu0 0.0
    %1292 = vmatmul.mubr.f32.gmra.mxu0 %v1225
    %v1293 = vpop.f32.mrf.mxu0
    %v1294 = vadd.f32 0.0, %v1293
    %v1295 = vpop.f32.mrf.mxu0
    %1296 = vdwg.mxu0
    %1297 = vrot.lane.b32.xlu0 %v171, 120
    %v1298 = vpop.permute.xlu0 %1297
    %1299 = vrot.lane.b32.xlu0 %v171, 88
    %v1300 = vpop.permute.xlu0 %1299
    %v1301 = vsel %vm181, %v1298, 0
    %v1303 = vsel %vm181, %v1300, 0
    %1305 = vmatprep.subr.mxu0 0.0
    %1306 = vmatpush1.xpose.msra.mxu0 0.0
    %1307 = vmatprep.subr.mxu0 0.0
    %1308 = vmatpush1.xpose.msra.mxu0 0.0
    %1309 = vmatprep.subr.mxu0 0.0
    %1310 = vmatpush1.xpose.msra.mxu0 0.0
    %1311 = vmatprep.subr.mxu0 0.0
    %1312 = vmatpush1.xpose.msra.mxu0 0.0
    %1313 = vmatprep.subr.mxu0 0.0
    %1314 = vmatpush1.xpose.msra.mxu0 0.0
    %1315 = vmatprep.subr.mxu0 0.0
    %1316 = vmatpush1.xpose.msra.mxu0 0.0
    %1317 = vmatprep.subr.mxu0 0.0
    %1318 = vmatpush1.xpose.msra.mxu0 0.0
    %1319 = vmatprep.subr.mxu0 0.0
    %1320 = vmatpush1.xpose.msra.mxu0 0.0
    %1321 = vmatprep.subr.mxu0 0.0
    %1322 = vmatpush1.xpose.msra.mxu0 0.0
    %1323 = vmatprep.subr.mxu0 0.0
    %1324 = vmatpush1.xpose.msra.mxu0 0.0
    %1325 = vmatprep.subr.mxu0 0.0
    %1326 = vmatpush1.xpose.msra.mxu0 0.0
    %1327 = vmatprep.subr.mxu0 0.0
    %1328 = vmatpush1.xpose.msra.mxu0 0.0
    %1329 = vmatprep.subr.mxu0 0.0
    %1330 = vmatpush1.xpose.msra.mxu0 0.0
    %1331 = vmatprep.subr.mxu0 0.0
    %1332 = vmatpush1.xpose.msra.mxu0 0.0
    %1333 = vmatprep.subr.mxu0 0.0
    %1334 = vmatpush1.xpose.msra.mxu0 0.0
    %1335 = vmatprep.subr.mxu0 0.0
    %1336 = vmatpush1.xpose.msra.mxu0 %v1303
    %1337 = vmatprep.subr.mxu0 0.0
    %1338 = vmatpush2.xpose.msra.mxu0 0.0
    %1339 = vmatprep.subr.mxu0 0.0
    %1340 = vmatpush2.xpose.msra.mxu0 0.0
    %1341 = vmatprep.subr.mxu0 0.0
    %1342 = vmatpush2.xpose.msra.mxu0 0.0
    %1343 = vmatprep.subr.mxu0 0.0
    %1344 = vmatpush2.xpose.msra.mxu0 0.0
    %1345 = vmatprep.subr.mxu0 0.0
    %1346 = vmatpush2.xpose.msra.mxu0 0.0
    %1347 = vmatprep.subr.mxu0 0.0
    %1348 = vmatpush2.xpose.msra.mxu0 0.0
    %1349 = vmatprep.subr.mxu0 0.0
    %1350 = vmatpush2.xpose.msra.mxu0 0.0
    %1351 = vmatprep.subr.mxu0 0.0
    %1352 = vmatpush2.xpose.msra.mxu0 0.0
    %1353 = vmatprep.subr.mxu0 0.0
    %1354 = vmatpush2.xpose.msra.mxu0 0.0
    %1355 = vmatprep.subr.mxu0 0.0
    %1356 = vmatpush2.xpose.msra.mxu0 0.0
    %1357 = vmatprep.subr.mxu0 0.0
    %1358 = vmatpush2.xpose.msra.mxu0 0.0
    %1359 = vmatprep.subr.mxu0 0.0
    %1360 = vmatpush2.xpose.msra.mxu0 0.0
    %1361 = vmatprep.subr.mxu0 0.0
    %1362 = vmatpush2.xpose.msra.mxu0 0.0
    %1363 = vmatprep.subr.mxu0 0.0
    %1364 = vmatpush2.xpose.msra.mxu0 0.0
    %1365 = vmatprep.subr.mxu0 0.0
    %1366 = vmatpush2.xpose.msra.mxu0 0.0
    %1367 = vmatprep.subr.mxu0 0.0
    %1368 = vmatpush2.xpose.msra.mxu0 0.0
    %1369 = vmatprep.mubr.f32.mxu0 0.0
    %1370 = vmatmul.mubr.f32.gmra.mxu0 %v1301
    %v1371 = vpop.f32.mrf.mxu0
    %v1372 = vadd.f32 0.0, %v1371
    %v1373 = vpop.f32.mrf.mxu0
    %1374 = vdwg.mxu0
    %v1375 = vsel %vm181, %v1372, -inf
    %1376 = vmax.xlane.f32.xlu0 %v1375
    %v1377 = vpop.xlane.xlu0 %1376
    %v1378 = vsub.f32 %v1372, %v1377
    %v1379 = vmul.f32 %v1378, 1.442695
    %v1380 = vpow.pop %v1379
    %v1381 = vsel %vm181, %v1380, 0.0
    %1382 = vadd.xlane.f32.xlu0 %v1381
    %v1383 = vpop.xlane.xlu0 %1382
    %v1384 = vrcp.pop %v1383
    %v1385 = vmul.f32 %v1380, %v1384
    %1386 = vrot.lane.b32.xlu0 %v171, 56
    %v1387 = vpop.permute.xlu0 %1386
    %v1390 = vsel %vm181, %v1385, 0
    %1392 = vmatprep.subr.mxu0 0.0
    %1393 = vmatpush1.msra.mxu0 0.0
    %1394 = vmatprep.subr.mxu0 0.0
    %1395 = vmatpush1.msra.mxu0 0.0
    %1396 = vmatprep.subr.mxu0 0.0
    %1397 = vmatpush1.msra.mxu0 0.0
    %1398 = vmatprep.subr.mxu0 0.0
    %1399 = vmatpush1.msra.mxu0 0.0
    %1400 = vmatprep.subr.mxu0 0.0
    %1401 = vmatpush1.msra.mxu0 0.0
    %1402 = vmatprep.subr.mxu0 0.0
    %1403 = vmatpush1.msra.mxu0 0.0
    %1404 = vmatprep.subr.mxu0 0.0
    %1405 = vmatpush1.msra.mxu0 0.0
    %1406 = vmatprep.subr.mxu0 0.0
    %1407 = vmatpush1.msra.mxu0 0.0
    %1408 = vmatprep.subr.mxu0 0.0
    %1409 = vmatpush1.msra.mxu0 0.0
    %1410 = vmatprep.subr.mxu0 0.0
    %1411 = vmatpush1.msra.mxu0 0.0
    %1412 = vmatprep.subr.mxu0 0.0
    %1413 = vmatpush1.msra.mxu0 0.0
    %1414 = vmatprep.subr.mxu0 0.0
    %1415 = vmatpush1.msra.mxu0 0.0
    %1416 = vmatprep.subr.mxu0 0.0
    %1417 = vmatpush1.msra.mxu0 0.0
    %1418 = vmatprep.subr.mxu0 0.0
    %1419 = vmatpush1.msra.mxu0 0.0
    %1420 = vmatprep.subr.mxu0 0.0
    %1421 = vmatpush1.msra.mxu0 0.0
    %1422 = vmatprep.subr.mxu0 0.0
    %1423 = vmatpush1.msra.mxu0 %v1387
    %1424 = vmatprep.subr.mxu0 0.0
    %1425 = vmatpush2.msra.mxu0 0.0
    %1426 = vmatprep.subr.mxu0 0.0
    %1427 = vmatpush2.msra.mxu0 0.0
    %1428 = vmatprep.subr.mxu0 0.0
    %1429 = vmatpush2.msra.mxu0 0.0
    %1430 = vmatprep.subr.mxu0 0.0
    %1431 = vmatpush2.msra.mxu0 0.0
    %1432 = vmatprep.subr.mxu0 0.0
    %1433 = vmatpush2.msra.mxu0 0.0
    %1434 = vmatprep.subr.mxu0 0.0
    %1435 = vmatpush2.msra.mxu0 0.0
    %1436 = vmatprep.subr.mxu0 0.0
    %1437 = vmatpush2.msra.mxu0 0.0
    %1438 = vmatprep.subr.mxu0 0.0
    %1439 = vmatpush2.msra.mxu0 0.0
    %1440 = vmatprep.subr.mxu0 0.0
    %1441 = vmatpush2.msra.mxu0 0.0
    %1442 = vmatprep.subr.mxu0 0.0
    %1443 = vmatpush2.msra.mxu0 0.0
    %1444 = vmatprep.subr.mxu0 0.0
    %1445 = vmatpush2.msra.mxu0 0.0
    %1446 = vmatprep.subr.mxu0 0.0
    %1447 = vmatpush2.msra.mxu0 0.0
    %1448 = vmatprep.subr.mxu0 0.0
    %1449 = vmatpush2.msra.mxu0 0.0
    %1450 = vmatprep.subr.mxu0 0.0
    %1451 = vmatpush2.msra.mxu0 0.0
    %1452 = vmatprep.subr.mxu0 0.0
    %1453 = vmatpush2.msra.mxu0 0.0
    %1454 = vmatprep.subr.mxu0 0.0
    %1455 = vmatpush2.msra.mxu0 0.0
    %1456 = vmatprep.mubr.f32.mxu0 0.0
    %1457 = vmatmul.mubr.f32.gmra.mxu0 %v1390
    %v1458 = vpop.f32.mrf.mxu0
    %v1459 = vadd.f32 0.0, %v1458
    %v1460 = vpop.f32.mrf.mxu0
    %1461 = vdwg.mxu0
    %v1463 = vsel %vm181, %v1459, 0
    %1465 = vmatprep.subr.mxu0 0.0
    %1466 = vmatpush1.msra.mxu0 0.0
    %1467 = vmatprep.subr.mxu0 0.0
    %1468 = vmatpush1.msra.mxu0 0.0
    %1469 = vmatprep.subr.mxu0 0.0
    %1470 = vmatpush1.msra.mxu0 0.0
    %1471 = vmatprep.subr.mxu0 0.0
    %1472 = vmatpush1.msra.mxu0 0.0
    %1473 = vmatprep.subr.mxu0 0.0
    %1474 = vmatpush1.msra.mxu0 0.0
    %1475 = vmatprep.subr.mxu0 0.0
    %1476 = vmatpush1.msra.mxu0 0.0
    %1477 = vmatprep.subr.mxu0 0.0
    %1478 = vmatpush1.msra.mxu0 0.0
    %1479 = vmatprep.subr.mxu0 0.0
    %1480 = vmatpush1.msra.mxu0 0.0
    %1481 = vmatprep.subr.mxu0 0.0
    %1482 = vmatpush1.msra.mxu0 0.0
    %1483 = vmatprep.subr.mxu0 0.0
    %1484 = vmatpush1.msra.mxu0 0.0
    %1485 = vmatprep.subr.mxu0 0.0
    %1486 = vmatpush1.msra.mxu0 0.0
    %1487 = vmatprep.subr.mxu0 0.0
    %1488 = vmatpush1.msra.mxu0 0.0
    %1489 = vmatprep.subr.mxu0 0.0
    %1490 = vmatpush1.msra.mxu0 0.0
    %1491 = vmatprep.subr.mxu0 0.0
    %1492 = vmatpush1.msra.mxu0 0.0
    %1493 = vmatprep.subr.mxu0 0.0
    %1494 = vmatpush1.msra.mxu0 0.0
    %1495 = vmatprep.subr.mxu0 0.0
    %1496 = vmatpush1.msra.mxu0 %v175
    %1497 = vmatprep.subr.mxu0 0.0
    %1498 = vmatpush2.msra.mxu0 0.0
    %1499 = vmatprep.subr.mxu0 0.0
    %1500 = vmatpush2.msra.mxu0 0.0
    %1501 = vmatprep.subr.mxu0 0.0
    %1502 = vmatpush2.msra.mxu0 0.0
    %1503 = vmatprep.subr.mxu0 0.0
    %1504 = vmatpush2.msra.mxu0 0.0
    %1505 = vmatprep.subr.mxu0 0.0
    %1506 = vmatpush2.msra.mxu0 0.0
    %1507 = vmatprep.subr.mxu0 0.0
    %1508 = vmatpush2.msra.mxu0 0.0
    %1509 = vmatprep.subr.mxu0 0.0
    %1510 = vmatpush2.msra.mxu0 0.0
    %1511 = vmatprep.subr.mxu0 0.0
    %1512 = vmatpush2.msra.mxu0 0.0
    %1513 = vmatprep.subr.mxu0 0.0
    %1514 = vmatpush2.msra.mxu0 0.0
    %1515 = vmatprep.subr.mxu0 0.0
    %1516 = vmatpush2.msra.mxu0 0.0
    %1517 = vmatprep.subr.mxu0 0.0
    %1518 = vmatpush2.msra.mxu0 0.0
    %1519 = vmatprep.subr.mxu0 0.0
    %1520 = vmatpush2.msra.mxu0 0.0
    %1521 = vmatprep.subr.mxu0 0.0
    %1522 = vmatpush2.msra.mxu0 0.0
    %1523 = vmatprep.subr.mxu0 0.0
    %1524 = vmatpush2.msra.mxu0 0.0
    %1525 = vmatprep.subr.mxu0 0.0
    %1526 = vmatpush2.msra.mxu0 0.0
    %1527 = vmatprep.subr.mxu0 0.0
    %1528 = vmatpush2.msra.mxu0 0.0
    %1529 = vmatprep.mubr.f32.mxu0 0.0
    %1530 = vmatmul.mubr.f32.gmra.mxu0 %v1463
    %v1531 = vpop.f32.mrf.mxu0
    %v1532 = vadd.f32 0.0, %v1531
    %v1533 = vpop.f32.mrf.mxu0
    %1534 = vdwg.mxu0
    %v1536 = vsel %vm181, %v1294, 0
    %1538 = vmatprep.subr.mxu0 0.0
    %1539 = vmatpush1.msra.mxu0 0.0
    %1540 = vmatprep.subr.mxu0 0.0
    %1541 = vmatpush1.msra.mxu0 0.0
    %1542 = vmatprep.subr.mxu0 0.0
    %1543 = vmatpush1.msra.mxu0 0.0
    %1544 = vmatprep.subr.mxu0 0.0
    %1545 = vmatpush1.msra.mxu0 0.0
    %1546 = vmatprep.subr.mxu0 0.0
    %1547 = vmatpush1.msra.mxu0 0.0
    %1548 = vmatprep.subr.mxu0 0.0
    %1549 = vmatpush1.msra.mxu0 0.0
    %1550 = vmatprep.subr.mxu0 0.0
    %1551 = vmatpush1.msra.mxu0 0.0
    %1552 = vmatprep.subr.mxu0 0.0
    %1553 = vmatpush1.msra.mxu0 0.0
    %1554 = vmatprep.subr.mxu0 0.0
    %1555 = vmatpush1.msra.mxu0 0.0
    %1556 = vmatprep.subr.mxu0 0.0
    %1557 = vmatpush1.msra.mxu0 0.0
    %1558 = vmatprep.subr.mxu0 0.0
    %1559 = vmatpush1.msra.mxu0 0.0
    %1560 = vmatprep.subr.mxu0 0.0
    %1561 = vmatpush1.msra.mxu0 0.0
    %1562 = vmatprep.subr.mxu0 0.0
    %1563 = vmatpush1.msra.mxu0 0.0
    %1564 = vmatprep.subr.mxu0 0.0
    %1565 = vmatpush1.msra.mxu0 0.0
    %1566 = vmatprep.subr.mxu0 0.0
    %1567 = vmatpush1.msra.mxu0 0.0
    %1568 = vmatprep.subr.mxu0 0.0
    %1569 = vmatpush1.msra.mxu0 %v174
    %1570 = vmatprep.subr.mxu0 0.0
    %1571 = vmatpush2.msra.mxu0 0.0
    %1572 = vmatprep.subr.mxu0 0.0
    %1573 = vmatpush2.msra.mxu0 0.0
    %1574 = vmatprep.subr.mxu0 0.0
    %1575 = vmatpush2.msra.mxu0 0.0
    %1576 = vmatprep.subr.mxu0 0.0
    %1577 = vmatpush2.msra.mxu0 0.0
    %1578 = vmatprep.subr.mxu0 0.0
    %1579 = vmatpush2.msra.mxu0 0.0
    %1580 = vmatprep.subr.mxu0 0.0
    %1581 = vmatpush2.msra.mxu0 0.0
    %1582 = vmatprep.subr.mxu0 0.0
    %1583 = vmatpush2.msra.mxu0 0.0
    %1584 = vmatprep.subr.mxu0 0.0
    %1585 = vmatpush2.msra.mxu0 0.0
    %1586 = vmatprep.subr.mxu0 0.0
    %1587 = vmatpush2.msra.mxu0 0.0
    %1588 = vmatprep.subr.mxu0 0.0
    %1589 = vmatpush2.msra.mxu0 0.0
    %1590 = vmatprep.subr.mxu0 0.0
    %1591 = vmatpush2.msra.mxu0 0.0
    %1592 = vmatprep.subr.mxu0 0.0
    %1593 = vmatpush2.msra.mxu0 0.0
    %1594 = vmatprep.subr.mxu0 0.0
    %1595 = vmatpush2.msra.mxu0 0.0
    %1596 = vmatprep.subr.mxu0 0.0
    %1597 = vmatpush2.msra.mxu0 0.0
    %1598 = vmatprep.subr.mxu0 0.0
    %1599 = vmatpush2.msra.mxu0 0.0
    %1600 = vmatprep.subr.mxu0 0.0
    %1601 = vmatpush2.msra.mxu0 0.0
    %1602 = vmatprep.mubr.f32.mxu0 0.0
    %1603 = vmatmul.mubr.f32.gmra.mxu0 %v1536
    %v1604 = vpop.f32.mrf.mxu0
    %v1605 = vadd.f32 %v1532, %v1604
    %v1606 = vpop.f32.mrf.mxu0
    %1607 = vdwg.mxu0
    %1608 = vrot.lane.b32.xlu0 %v171, 112
    %v1609 = vpop.permute.xlu0 %1608
    %1610 = vrot.lane.b32.xlu0 %v171, 80
    %v1611 = vpop.permute.xlu0 %1610
    %v1612 = vsel %vm181, %v1609, 0
    %v1614 = vsel %vm181, %v1611, 0
    %1616 = vmatprep.subr.mxu0 0.0
    %1617 = vmatpush1.xpose.msra.mxu0 0.0
    %1618 = vmatprep.subr.mxu0 0.0
    %1619 = vmatpush1.xpose.msra.mxu0 0.0
    %1620 = vmatprep.subr.mxu0 0.0
    %1621 = vmatpush1.xpose.msra.mxu0 0.0
    %1622 = vmatprep.subr.mxu0 0.0
    %1623 = vmatpush1.xpose.msra.mxu0 0.0
    %1624 = vmatprep.subr.mxu0 0.0
    %1625 = vmatpush1.xpose.msra.mxu0 0.0
    %1626 = vmatprep.subr.mxu0 0.0
    %1627 = vmatpush1.xpose.msra.mxu0 0.0
    %1628 = vmatprep.subr.mxu0 0.0
    %1629 = vmatpush1.xpose.msra.mxu0 0.0
    %1630 = vmatprep.subr.mxu0 0.0
    %1631 = vmatpush1.xpose.msra.mxu0 0.0
    %1632 = vmatprep.subr.mxu0 0.0
    %1633 = vmatpush1.xpose.msra.mxu0 0.0
    %1634 = vmatprep.subr.mxu0 0.0
    %1635 = vmatpush1.xpose.msra.mxu0 0.0
    %1636 = vmatprep.subr.mxu0 0.0
    %1637 = vmatpush1.xpose.msra.mxu0 0.0
    %1638 = vmatprep.subr.mxu0 0.0
    %1639 = vmatpush1.xpose.msra.mxu0 0.0
    %1640 = vmatprep.subr.mxu0 0.0
    %1641 = vmatpush1.xpose.msra.mxu0 0.0
    %1642 = vmatprep.subr.mxu0 0.0
    %1643 = vmatpush1.xpose.msra.mxu0 0.0
    %1644 = vmatprep.subr.mxu0 0.0
    %1645 = vmatpush1.xpose.msra.mxu0 0.0
    %1646 = vmatprep.subr.mxu0 0.0
    %1647 = vmatpush1.xpose.msra.mxu0 %v1614
    %1648 = vmatprep.subr.mxu0 0.0
    %1649 = vmatpush2.xpose.msra.mxu0 0.0
    %1650 = vmatprep.subr.mxu0 0.0
    %1651 = vmatpush2.xpose.msra.mxu0 0.0
    %1652 = vmatprep.subr.mxu0 0.0
    %1653 = vmatpush2.xpose.msra.mxu0 0.0
    %1654 = vmatprep.subr.mxu0 0.0
    %1655 = vmatpush2.xpose.msra.mxu0 0.0
    %1656 = vmatprep.subr.mxu0 0.0
    %1657 = vmatpush2.xpose.msra.mxu0 0.0
    %1658 = vmatprep.subr.mxu0 0.0
    %1659 = vmatpush2.xpose.msra.mxu0 0.0
    %1660 = vmatprep.subr.mxu0 0.0
    %1661 = vmatpush2.xpose.msra.mxu0 0.0
    %1662 = vmatprep.subr.mxu0 0.0
    %1663 = vmatpush2.xpose.msra.mxu0 0.0
    %1664 = vmatprep.subr.mxu0 0.0
    %1665 = vmatpush2.xpose.msra.mxu0 0.0
    %1666 = vmatprep.subr.mxu0 0.0
    %1667 = vmatpush2.xpose.msra.mxu0 0.0
    %1668 = vmatprep.subr.mxu0 0.0
    %1669 = vmatpush2.xpose.msra.mxu0 0.0
    %1670 = vmatprep.subr.mxu0 0.0
    %1671 = vmatpush2.xpose.msra.mxu0 0.0
    %1672 = vmatprep.subr.mxu0 0.0
    %1673 = vmatpush2.xpose.msra.mxu0 0.0
    %1674 = vmatprep.subr.mxu0 0.0
    %1675 = vmatpush2.xpose.msra.mxu0 0.0
    %1676 = vmatprep.subr.mxu0 0.0
    %1677 = vmatpush2.xpose.msra.mxu0 0.0
    %1678 = vmatprep.subr.mxu0 0.0
    %1679 = vmatpush2.xpose.msra.mxu0 0.0
    %1680 = vmatprep.mubr.f32.mxu0 0.0
    %1681 = vmatmul.mubr.f32.gmra.mxu0 %v1612
    %v1682 = vpop.f32.mrf.mxu0
    %v1683 = vadd.f32 0.0, %v1682
    %v1684 = vpop.f32.mrf.mxu0
    %1685 = vdwg.mxu0
    %v1686 = vsel %vm181, %v1683, -inf
    %1687 = vmax.xlane.f32.xlu0 %v1686
    %v1688 = vpop.xlane.xlu0 %1687
    %v1689 = vsub.f32 %v1683, %v1688
    %v1690 = vmul.f32 %v1689, 1.442695
    %v1691 = vpow.pop %v1690
    %v1692 = vsel %vm181, %v1691, 0.0
    %1693 = vadd.xlane.f32.xlu0 %v1692
    %v1694 = vpop.xlane.xlu0 %1693
    %v1695 = vrcp.pop %v1694
    %v1696 = vmul.f32 %v1691, %v1695
    %1697 = vrot.lane.b32.xlu0 %v171, 48
    %v1698 = vpop.permute.xlu0 %1697
    %v1701 = vsel %vm181, %v1696, 0
    %1703 = vmatprep.subr.mxu0 0.0
    %1704 = vmatpush1.msra.mxu0 0.0
    %1705 = vmatprep.subr.mxu0 0.0
    %1706 = vmatpush1.msra.mxu0 0.0
    %1707 = vmatprep.subr.mxu0 0.0
    %1708 = vmatpush1.msra.mxu0 0.0
    %1709 = vmatprep.subr.mxu0 0.0
    %1710 = vmatpush1.msra.mxu0 0.0
    %1711 = vmatprep.subr.mxu0 0.0
    %1712 = vmatpush1.msra.mxu0 0.0
    %1713 = vmatprep.subr.mxu0 0.0
    %1714 = vmatpush1.msra.mxu0 0.0
    %1715 = vmatprep.subr.mxu0 0.0
    %1716 = vmatpush1.msra.mxu0 0.0
    %1717 = vmatprep.subr.mxu0 0.0
    %1718 = vmatpush1.msra.mxu0 0.0
    %1719 = vmatprep.subr.mxu0 0.0
    %1720 = vmatpush1.msra.mxu0 0.0
    %1721 = vmatprep.subr.mxu0 0.0
    %1722 = vmatpush1.msra.mxu0 0.0
    %1723 = vmatprep.subr.mxu0 0.0
    %1724 = vmatpush1.msra.mxu0 0.0
    %1725 = vmatprep.subr.mxu0 0.0
    %1726 = vmatpush1.msra.mxu0 0.0
    %1727 = vmatprep.subr.mxu0 0.0
    %1728 = vmatpush1.msra.mxu0 0.0
    %1729 = vmatprep.subr.mxu0 0.0
    %1730 = vmatpush1.msra.mxu0 0.0
    %1731 = vmatprep.subr.mxu0 0.0
    %1732 = vmatpush1.msra.mxu0 0.0
    %1733 = vmatprep.subr.mxu0 0.0
    %1734 = vmatpush1.msra.mxu0 %v1698
    %1735 = vmatprep.subr.mxu0 0.0
    %1736 = vmatpush2.msra.mxu0 0.0
    %1737 = vmatprep.subr.mxu0 0.0
    %1738 = vmatpush2.msra.mxu0 0.0
    %1739 = vmatprep.subr.mxu0 0.0
    %1740 = vmatpush2.msra.mxu0 0.0
    %1741 = vmatprep.subr.mxu0 0.0
    %1742 = vmatpush2.msra.mxu0 0.0
    %1743 = vmatprep.subr.mxu0 0.0
    %1744 = vmatpush2.msra.mxu0 0.0
    %1745 = vmatprep.subr.mxu0 0.0
    %1746 = vmatpush2.msra.mxu0 0.0
    %1747 = vmatprep.subr.mxu0 0.0
    %1748 = vmatpush2.msra.mxu0 0.0
    %1749 = vmatprep.subr.mxu0 0.0
    %1750 = vmatpush2.msra.mxu0 0.0
    %1751 = vmatprep.subr.mxu0 0.0
    %1752 = vmatpush2.msra.mxu0 0.0
    %1753 = vmatprep.subr.mxu0 0.0
    %1754 = vmatpush2.msra.mxu0 0.0
    %1755 = vmatprep.subr.mxu0 0.0
    %1756 = vmatpush2.msra.mxu0 0.0
    %1757 = vmatprep.subr.mxu0 0.0
    %1758 = vmatpush2.msra.mxu0 0.0
    %1759 = vmatprep.subr.mxu0 0.0
    %1760 = vmatpush2.msra.mxu0 0.0
    %1761 = vmatprep.subr.mxu0 0.0
    %1762 = vmatpush2.msra.mxu0 0.0
    %1763 = vmatprep.subr.mxu0 0.0
    %1764 = vmatpush2.msra.mxu0 0.0
    %1765 = vmatprep.subr.mxu0 0.0
    %1766 = vmatpush2.msra.mxu0 0.0
    %1767 = vmatprep.mubr.f32.mxu0 0.0
    %1768 = vmatmul.mubr.f32.gmra.mxu0 %v1701
    %v1769 = vpop.f32.mrf.mxu0
    %v1770 = vadd.f32 0.0, %v1769
    %v1771 = vpop.f32.mrf.mxu0
    %1772 = vdwg.mxu0
    %v1774 = vsel %vm181, %v1770, 0
    %1776 = vmatprep.subr.mxu0 0.0
    %1777 = vmatpush1.msra.mxu0 0.0
    %1778 = vmatprep.subr.mxu0 0.0
    %1779 = vmatpush1.msra.mxu0 0.0
    %1780 = vmatprep.subr.mxu0 0.0
    %1781 = vmatpush1.msra.mxu0 0.0
    %1782 = vmatprep.subr.mxu0 0.0
    %1783 = vmatpush1.msra.mxu0 0.0
    %1784 = vmatprep.subr.mxu0 0.0
    %1785 = vmatpush1.msra.mxu0 0.0
    %1786 = vmatprep.subr.mxu0 0.0
    %1787 = vmatpush1.msra.mxu0 0.0
    %1788 = vmatprep.subr.mxu0 0.0
    %1789 = vmatpush1.msra.mxu0 0.0
    %1790 = vmatprep.subr.mxu0 0.0
    %1791 = vmatpush1.msra.mxu0 0.0
    %1792 = vmatprep.subr.mxu0 0.0
    %1793 = vmatpush1.msra.mxu0 0.0
    %1794 = vmatprep.subr.mxu0 0.0
    %1795 = vmatpush1.msra.mxu0 0.0
    %1796 = vmatprep.subr.mxu0 0.0
    %1797 = vmatpush1.msra.mxu0 0.0
    %1798 = vmatprep.subr.mxu0 0.0
    %1799 = vmatpush1.msra.mxu0 0.0
    %1800 = vmatprep.subr.mxu0 0.0
    %1801 = vmatpush1.msra.mxu0 0.0
    %1802 = vmatprep.subr.mxu0 0.0
    %1803 = vmatpush1.msra.mxu0 0.0
    %1804 = vmatprep.subr.mxu0 0.0
    %1805 = vmatpush1.msra.mxu0 0.0
    %1806 = vmatprep.subr.mxu0 0.0
    %1807 = vmatpush1.msra.mxu0 %v176
    %1808 = vmatprep.subr.mxu0 0.0
    %1809 = vmatpush2.msra.mxu0 0.0
    %1810 = vmatprep.subr.mxu0 0.0
    %1811 = vmatpush2.msra.mxu0 0.0
    %1812 = vmatprep.subr.mxu0 0.0
    %1813 = vmatpush2.msra.mxu0 0.0
    %1814 = vmatprep.subr.mxu0 0.0
    %1815 = vmatpush2.msra.mxu0 0.0
    %1816 = vmatprep.subr.mxu0 0.0
    %1817 = vmatpush2.msra.mxu0 0.0
    %1818 = vmatprep.subr.mxu0 0.0
    %1819 = vmatpush2.msra.mxu0 0.0
    %1820 = vmatprep.subr.mxu0 0.0
    %1821 = vmatpush2.msra.mxu0 0.0
    %1822 = vmatprep.subr.mxu0 0.0
    %1823 = vmatpush2.msra.mxu0 0.0
    %1824 = vmatprep.subr.mxu0 0.0
    %1825 = vmatpush2.msra.mxu0 0.0
    %1826 = vmatprep.subr.mxu0 0.0
    %1827 = vmatpush2.msra.mxu0 0.0
    %1828 = vmatprep.subr.mxu0 0.0
    %1829 = vmatpush2.msra.mxu0 0.0
    %1830 = vmatprep.subr.mxu0 0.0
    %1831 = vmatpush2.msra.mxu0 0.0
    %1832 = vmatprep.subr.mxu0 0.0
    %1833 = vmatpush2.msra.mxu0 0.0
    %1834 = vmatprep.subr.mxu0 0.0
    %1835 = vmatpush2.msra.mxu0 0.0
    %1836 = vmatprep.subr.mxu0 0.0
    %1837 = vmatpush2.msra.mxu0 0.0
    %1838 = vmatprep.subr.mxu0 0.0
    %1839 = vmatpush2.msra.mxu0 0.0
    %1840 = vmatprep.mubr.f32.mxu0 0.0
    %1841 = vmatmul.mubr.f32.gmra.mxu0 %v1774
    %v1842 = vpop.f32.mrf.mxu0
    %v1843 = vadd.f32 0.0, %v1842
    %v1844 = vpop.f32.mrf.mxu0
    %1845 = vdwg.mxu0
    %v1846 = vadd.f32 %v1605, %v1843
    %1847 = vrot.lane.b32.xlu0 %v171, 104
    %v1848 = vpop.permute.xlu0 %1847
    %1849 = vrot.lane.b32.xlu0 %v171, 72
    %v1850 = vpop.permute.xlu0 %1849
    %v1851 = vsel %vm181, %v1848, 0
    %v1853 = vsel %vm181, %v1850, 0
    %1855 = vmatprep.subr.mxu0 0.0
    %1856 = vmatpush1.xpose.msra.mxu0 0.0
    %1857 = vmatprep.subr.mxu0 0.0
    %1858 = vmatpush1.xpose.msra.mxu0 0.0
    %1859 = vmatprep.subr.mxu0 0.0
    %1860 = vmatpush1.xpose.msra.mxu0 0.0
    %1861 = vmatprep.subr.mxu0 0.0
    %1862 = vmatpush1.xpose.msra.mxu0 0.0
    %1863 = vmatprep.subr.mxu0 0.0
    %1864 = vmatpush1.xpose.msra.mxu0 0.0
    %1865 = vmatprep.subr.mxu0 0.0
    %1866 = vmatpush1.xpose.msra.mxu0 0.0
    %1867 = vmatprep.subr.mxu0 0.0
    %1868 = vmatpush1.xpose.msra.mxu0 0.0
    %1869 = vmatprep.subr.mxu0 0.0
    %1870 = vmatpush1.xpose.msra.mxu0 0.0
    %1871 = vmatprep.subr.mxu0 0.0
    %1872 = vmatpush1.xpose.msra.mxu0 0.0
    %1873 = vmatprep.subr.mxu0 0.0
    %1874 = vmatpush1.xpose.msra.mxu0 0.0
    %1875 = vmatprep.subr.mxu0 0.0
    %1876 = vmatpush1.xpose.msra.mxu0 0.0
    %1877 = vmatprep.subr.mxu0 0.0
    %1878 = vmatpush1.xpose.msra.mxu0 0.0
    %1879 = vmatprep.subr.mxu0 0.0
    %1880 = vmatpush1.xpose.msra.mxu0 0.0
    %1881 = vmatprep.subr.mxu0 0.0
    %1882 = vmatpush1.xpose.msra.mxu0 0.0
    %1883 = vmatprep.subr.mxu0 0.0
    %1884 = vmatpush1.xpose.msra.mxu0 0.0
    %1885 = vmatprep.subr.mxu0 0.0
    %1886 = vmatpush1.xpose.msra.mxu0 %v1853
    %1887 = vmatprep.subr.mxu0 0.0
    %1888 = vmatpush2.xpose.msra.mxu0 0.0
    %1889 = vmatprep.subr.mxu0 0.0
    %1890 = vmatpush2.xpose.msra.mxu0 0.0
    %1891 = vmatprep.subr.mxu0 0.0
    %1892 = vmatpush2.xpose.msra.mxu0 0.0
    %1893 = vmatprep.subr.mxu0 0.0
    %1894 = vmatpush2.xpose.msra.mxu0 0.0
    %1895 = vmatprep.subr.mxu0 0.0
    %1896 = vmatpush2.xpose.msra.mxu0 0.0
    %1897 = vmatprep.subr.mxu0 0.0
    %1898 = vmatpush2.xpose.msra.mxu0 0.0
    %1899 = vmatprep.subr.mxu0 0.0
    %1900 = vmatpush2.xpose.msra.mxu0 0.0
    %1901 = vmatprep.subr.mxu0 0.0
    %1902 = vmatpush2.xpose.msra.mxu0 0.0
    %1903 = vmatprep.subr.mxu0 0.0
    %1904 = vmatpush2.xpose.msra.mxu0 0.0
    %1905 = vmatprep.subr.mxu0 0.0
    %1906 = vmatpush2.xpose.msra.mxu0 0.0
    %1907 = vmatprep.subr.mxu0 0.0
    %1908 = vmatpush2.xpose.msra.mxu0 0.0
    %1909 = vmatprep.subr.mxu0 0.0
    %1910 = vmatpush2.xpose.msra.mxu0 0.0
    %1911 = vmatprep.subr.mxu0 0.0
    %1912 = vmatpush2.xpose.msra.mxu0 0.0
    %1913 = vmatprep.subr.mxu0 0.0
    %1914 = vmatpush2.xpose.msra.mxu0 0.0
    %1915 = vmatprep.subr.mxu0 0.0
    %1916 = vmatpush2.xpose.msra.mxu0 0.0
    %1917 = vmatprep.subr.mxu0 0.0
    %1918 = vmatpush2.xpose.msra.mxu0 0.0
    %1919 = vmatprep.mubr.f32.mxu0 0.0
    %1920 = vmatmul.mubr.f32.gmra.mxu0 %v1851
    %v1921 = vpop.f32.mrf.mxu0
    %v1922 = vadd.f32 0.0, %v1921
    %v1923 = vpop.f32.mrf.mxu0
    %1924 = vdwg.mxu0
    %v1925 = vsel %vm181, %v1922, -inf
    %1926 = vmax.xlane.f32.xlu0 %v1925
    %v1927 = vpop.xlane.xlu0 %1926
    %v1928 = vsub.f32 %v1922, %v1927
    %v1929 = vmul.f32 %v1928, 1.442695
    %v1930 = vpow.pop %v1929
    %v1931 = vsel %vm181, %v1930, 0.0
    %1932 = vadd.xlane.f32.xlu0 %v1931
    %v1933 = vpop.xlane.xlu0 %1932
    %v1934 = vrcp.pop %v1933
    %v1935 = vmul.f32 %v1930, %v1934
    %1936 = vrot.lane.b32.xlu0 %v171, 40
    %v1937 = vpop.permute.xlu0 %1936
    %v1940 = vsel %vm181, %v1935, 0
    %1942 = vmatprep.subr.mxu0 0.0
    %1943 = vmatpush1.msra.mxu0 0.0
    %1944 = vmatprep.subr.mxu0 0.0
    %1945 = vmatpush1.msra.mxu0 0.0
    %1946 = vmatprep.subr.mxu0 0.0
    %1947 = vmatpush1.msra.mxu0 0.0
    %1948 = vmatprep.subr.mxu0 0.0
    %1949 = vmatpush1.msra.mxu0 0.0
    %1950 = vmatprep.subr.mxu0 0.0
    %1951 = vmatpush1.msra.mxu0 0.0
    %1952 = vmatprep.subr.mxu0 0.0
    %1953 = vmatpush1.msra.mxu0 0.0
    %1954 = vmatprep.subr.mxu0 0.0
    %1955 = vmatpush1.msra.mxu0 0.0
    %1956 = vmatprep.subr.mxu0 0.0
    %1957 = vmatpush1.msra.mxu0 0.0
    %1958 = vmatprep.subr.mxu0 0.0
    %1959 = vmatpush1.msra.mxu0 0.0
    %1960 = vmatprep.subr.mxu0 0.0
    %1961 = vmatpush1.msra.mxu0 0.0
    %1962 = vmatprep.subr.mxu0 0.0
    %1963 = vmatpush1.msra.mxu0 0.0
    %1964 = vmatprep.subr.mxu0 0.0
    %1965 = vmatpush1.msra.mxu0 0.0
    %1966 = vmatprep.subr.mxu0 0.0
    %1967 = vmatpush1.msra.mxu0 0.0
    %1968 = vmatprep.subr.mxu0 0.0
    %1969 = vmatpush1.msra.mxu0 0.0
    %1970 = vmatprep.subr.mxu0 0.0
    %1971 = vmatpush1.msra.mxu0 0.0
    %1972 = vmatprep.subr.mxu0 0.0
    %1973 = vmatpush1.msra.mxu0 %v1937
    %1974 = vmatprep.subr.mxu0 0.0
    %1975 = vmatpush2.msra.mxu0 0.0
    %1976 = vmatprep.subr.mxu0 0.0
    %1977 = vmatpush2.msra.mxu0 0.0
    %1978 = vmatprep.subr.mxu0 0.0
    %1979 = vmatpush2.msra.mxu0 0.0
    %1980 = vmatprep.subr.mxu0 0.0
    %1981 = vmatpush2.msra.mxu0 0.0
    %1982 = vmatprep.subr.mxu0 0.0
    %1983 = vmatpush2.msra.mxu0 0.0
    %1984 = vmatprep.subr.mxu0 0.0
    %1985 = vmatpush2.msra.mxu0 0.0
    %1986 = vmatprep.subr.mxu0 0.0
    %1987 = vmatpush2.msra.mxu0 0.0
    %1988 = vmatprep.subr.mxu0 0.0
    %1989 = vmatpush2.msra.mxu0 0.0
    %1990 = vmatprep.subr.mxu0 0.0
    %1991 = vmatpush2.msra.mxu0 0.0
    %1992 = vmatprep.subr.mxu0 0.0
    %1993 = vmatpush2.msra.mxu0 0.0
    %1994 = vmatprep.subr.mxu0 0.0
    %1995 = vmatpush2.msra.mxu0 0.0
    %1996 = vmatprep.subr.mxu0 0.0
    %1997 = vmatpush2.msra.mxu0 0.0
    %1998 = vmatprep.subr.mxu0 0.0
    %1999 = vmatpush2.msra.mxu0 0.0
    %2000 = vmatprep.subr.mxu0 0.0
    %2001 = vmatpush2.msra.mxu0 0.0
    %2002 = vmatprep.subr.mxu0 0.0
    %2003 = vmatpush2.msra.mxu0 0.0
    %2004 = vmatprep.subr.mxu0 0.0
    %2005 = vmatpush2.msra.mxu0 0.0
    %2006 = vmatprep.mubr.f32.mxu0 0.0
    %2007 = vmatmul.mubr.f32.gmra.mxu0 %v1940
    %v2008 = vpop.f32.mrf.mxu0
    %v2009 = vadd.f32 0.0, %v2008
    %v2010 = vpop.f32.mrf.mxu0
    %2011 = vdwg.mxu0
    %v2013 = vsel %vm181, %v2009, 0
    %2015 = vmatprep.subr.mxu0 0.0
    %2016 = vmatpush1.msra.mxu0 0.0
    %2017 = vmatprep.subr.mxu0 0.0
    %2018 = vmatpush1.msra.mxu0 0.0
    %2019 = vmatprep.subr.mxu0 0.0
    %2020 = vmatpush1.msra.mxu0 0.0
    %2021 = vmatprep.subr.mxu0 0.0
    %2022 = vmatpush1.msra.mxu0 0.0
    %2023 = vmatprep.subr.mxu0 0.0
    %2024 = vmatpush1.msra.mxu0 0.0
    %2025 = vmatprep.subr.mxu0 0.0
    %2026 = vmatpush1.msra.mxu0 0.0
    %2027 = vmatprep.subr.mxu0 0.0
    %2028 = vmatpush1.msra.mxu0 0.0
    %2029 = vmatprep.subr.mxu0 0.0
    %2030 = vmatpush1.msra.mxu0 0.0
    %2031 = vmatprep.subr.mxu0 0.0
    %2032 = vmatpush1.msra.mxu0 0.0
    %2033 = vmatprep.subr.mxu0 0.0
    %2034 = vmatpush1.msra.mxu0 0.0
    %2035 = vmatprep.subr.mxu0 0.0
    %2036 = vmatpush1.msra.mxu0 0.0
    %2037 = vmatprep.subr.mxu0 0.0
    %2038 = vmatpush1.msra.mxu0 0.0
    %2039 = vmatprep.subr.mxu0 0.0
    %2040 = vmatpush1.msra.mxu0 0.0
    %2041 = vmatprep.subr.mxu0 0.0
    %2042 = vmatpush1.msra.mxu0 0.0
    %2043 = vmatprep.subr.mxu0 0.0
    %2044 = vmatpush1.msra.mxu0 0.0
    %2045 = vmatprep.subr.mxu0 0.0
    %2046 = vmatpush1.msra.mxu0 %v177
    %2047 = vmatprep.subr.mxu0 0.0
    %2048 = vmatpush2.msra.mxu0 0.0
    %2049 = vmatprep.subr.mxu0 0.0
    %2050 = vmatpush2.msra.mxu0 0.0
    %2051 = vmatprep.subr.mxu0 0.0
    %2052 = vmatpush2.msra.mxu0 0.0
    %2053 = vmatprep.subr.mxu0 0.0
    %2054 = vmatpush2.msra.mxu0 0.0
    %2055 = vmatprep.subr.mxu0 0.0
    %2056 = vmatpush2.msra.mxu0 0.0
    %2057 = vmatprep.subr.mxu0 0.0
    %2058 = vmatpush2.msra.mxu0 0.0
    %2059 = vmatprep.subr.mxu0 0.0
    %2060 = vmatpush2.msra.mxu0 0.0
    %2061 = vmatprep.subr.mxu0 0.0
    %2062 = vmatpush2.msra.mxu0 0.0
    %2063 = vmatprep.subr.mxu0 0.0
    %2064 = vmatpush2.msra.mxu0 0.0
    %2065 = vmatprep.subr.mxu0 0.0
    %2066 = vmatpush2.msra.mxu0 0.0
    %2067 = vmatprep.subr.mxu0 0.0
    %2068 = vmatpush2.msra.mxu0 0.0
    %2069 = vmatprep.subr.mxu0 0.0
    %2070 = vmatpush2.msra.mxu0 0.0
    %2071 = vmatprep.subr.mxu0 0.0
    %2072 = vmatpush2.msra.mxu0 0.0
    %2073 = vmatprep.subr.mxu0 0.0
    %2074 = vmatpush2.msra.mxu0 0.0
    %2075 = vmatprep.subr.mxu0 0.0
    %2076 = vmatpush2.msra.mxu0 0.0
    %2077 = vmatprep.subr.mxu0 0.0
    %2078 = vmatpush2.msra.mxu0 0.0
    %2079 = vmatprep.mubr.f32.mxu0 0.0
    %2080 = vmatmul.mubr.f32.gmra.mxu0 %v2013
    %v2081 = vpop.f32.mrf.mxu0
    %v2082 = vadd.f32 0.0, %v2081
    %v2083 = vpop.f32.mrf.mxu0
    %2084 = vdwg.mxu0
    %v2085 = vadd.f32 %v1846, %v2082
    %2086 = vst.msk [vmem:[#allocation2 + $0x8] sm:$0xff] %vm92, %v2085
    %v2087 = vld [vmem:[#allocation2] sm:$0xff]
    %v2088 = vld [vmem:[#allocation2 + $0x8] sm:$0xff]
    %v2089 = vld [vmem:[%s4] sm:$0x1]
    %v2091 = vlaneseq
    %v2092 = vshrl.u32 %v2091, 7
    %v2093 = vsub.s32 0, %v2092
    %v2094 = vrot.slane %v2089, %v2093
    %v2096 = vadd.f32 %v2087, %v2094
    %v2097 = vadd.f32 %v2088, %v2094
    %v2098 = vadd.f32 %v2096, %v79
    %v2099 = vadd.f32 %v2097, %v80
    %v2100 = vld [vmem:[#allocation9] sm:$0xff]
    %v2101 = vld [vmem:[#allocation9 + $0x8] sm:$0xff]
    %v2102 = vld [vmem:[#allocation9 + $0x10] sm:$0xff]
    %v2103 = vld [vmem:[#allocation9 + $0x18] sm:$0xff]
    %v2105 = vsel %vm92, %v2098, 0
    %v2108 = vsel %vm92, %v2099, 0
    %2110 = vmatprep.subr.mxu0 0.0
    %2111 = vmatpush1.msra.mxu0 0.0
    %2112 = vmatprep.subr.mxu0 0.0
    %2113 = vmatpush1.msra.mxu0 0.0
    %2114 = vmatprep.subr.mxu0 0.0
    %2115 = vmatpush1.msra.mxu0 0.0
    %2116 = vmatprep.subr.mxu0 0.0
    %2117 = vmatpush1.msra.mxu0 0.0
    %2118 = vmatprep.subr.mxu0 0.0
    %2119 = vmatpush1.msra.mxu0 0.0
    %2120 = vmatprep.subr.mxu0 0.0
    %2121 = vmatpush1.msra.mxu0 0.0
    %2122 = vmatprep.subr.mxu0 0.0
    %2123 = vmatpush1.msra.mxu0 0.0
    %2124 = vmatprep.subr.mxu0 0.0
    %2125 = vmatpush1.msra.mxu0 0.0
    %2126 = vmatprep.subr.mxu0 0.0
    %2127 = vmatpush1.msra.mxu0 0.0
    %2128 = vmatprep.subr.mxu0 0.0
    %2129 = vmatpush1.msra.mxu0 0.0
    %2130 = vmatprep.subr.mxu0 0.0
    %2131 = vmatpush1.msra.mxu0 0.0
    %2132 = vmatprep.subr.mxu0 0.0
    %2133 = vmatpush1.msra.mxu0 0.0
    %2134 = vmatprep.subr.mxu0 0.0
    %2135 = vmatpush1.msra.mxu0 %v2103
    %2136 = vmatprep.subr.mxu0 0.0
    %2137 = vmatpush1.msra.mxu0 %v2102
    %2138 = vmatprep.subr.mxu0 0.0
    %2139 = vmatpush1.msra.mxu0 %v2101
    %2140 = vmatprep.subr.mxu0 0.0
    %2141 = vmatpush1.msra.mxu0 %v2100
    %2142 = vmatprep.subr.mxu0 0.0
    %2143 = vmatpush2.msra.mxu0 0.0
    %2144 = vmatprep.subr.mxu0 0.0
    %2145 = vmatpush2.msra.mxu0 0.0
    %2146 = vmatprep.subr.mxu0 0.0
    %2147 = vmatpush2.msra.mxu0 0.0
    %2148 = vmatprep.subr.mxu0 0.0
    %2149 = vmatpush2.msra.mxu0 0.0
    %2150 = vmatprep.subr.mxu0 0.0
    %2151 = vmatpush2.msra.mxu0 0.0
    %2152 = vmatprep.subr.mxu0 0.0
    %2153 = vmatpush2.msra.mxu0 0.0
    %2154 = vmatprep.subr.mxu0 0.0
    %2155 = vmatpush2.msra.mxu0 0.0
    %2156 = vmatprep.subr.mxu0 0.0
    %2157 = vmatpush2.msra.mxu0 0.0
    %2158 = vmatprep.subr.mxu0 0.0
    %2159 = vmatpush2.msra.mxu0 0.0
    %2160 = vmatprep.subr.mxu0 0.0
    %2161 = vmatpush2.msra.mxu0 0.0
    %2162 = vmatprep.subr.mxu0 0.0
    %2163 = vmatpush2.msra.mxu0 0.0
    %2164 = vmatprep.subr.mxu0 0.0
    %2165 = vmatpush2.msra.mxu0 0.0
    %2166 = vmatprep.subr.mxu0 0.0
    %2167 = vmatpush2.msra.mxu0 0.0
    %2168 = vmatprep.subr.mxu0 0.0
    %2169 = vmatpush2.msra.mxu0 0.0
    %2170 = vmatprep.subr.mxu0 0.0
    %2171 = vmatpush2.msra.mxu0 0.0
    %2172 = vmatprep.subr.mxu0 0.0
    %2173 = vmatpush2.msra.mxu0 0.0
    %2174 = vmatprep.mubr.f32.mxu0 0.0
    %2175 = vmatmul.mubr.f32.gmra.mxu0 %v2105
    %v2176 = vpop.f32.mrf.mxu0
    %v2177 = vadd.f32 %v2098, %v2176
    %v2178 = vpop.f32.mrf.mxu0
    %2179 = vmatprep.mubr.f32.mxu0 0.0
    %2180 = vmatmul.mubr.f32.gmra.mxu0 %v2108
    %v2181 = vpop.f32.mrf.mxu0
    %v2182 = vadd.f32 %v2099, %v2181
    %v2183 = vpop.f32.mrf.mxu0
    %2184 = vdwg.mxu0
    %2185 = vst.msk [vmem:[#allocation11] sm:$0xff] %vm92, %v2177
    %2186 = vst.msk [vmem:[#allocation11 + $0x8] sm:$0xff] %vm92, %v2182
    // Predicated region
    $region42: #{tpu_custom_call.1} parent=1 // pred_check
      _
    $region43: #{tpu_custom_call.1} parent=1 // pred_check_branch
      %2188 = sbr.rel (0) target = $region45
    $region44: #{tpu_custom_call.1} parent=1 // pred_region
      %s2190 = ssub.s32 256, 256
      %2191 = vsyncadd [#allocation5], %s2190
      %s2192 = sshll.u32 [#allocation11], 4
      %s2193 = int_to_ptr.vmem [resolvable:$true] %s2192
      %2198 = dma.vmem_to_hbm [thread:$0]  %s2193, 256, %s6, [#allocation5], 128, 128, 8
    $region45: #{tpu_custom_call.1} parent=1 // pred_fallthru
      _
    // Predicated region
    $region46: #{tpu_custom_call.1} parent=1 // pred_check
      _
    $region47: #{tpu_custom_call.1} parent=1 // pred_check_branch
      %2200 = sbr.rel (0) target = $region49
    $region48: #{tpu_custom_call.1} parent=1 // pred_region
      %2201 = dma.done [#allocation5], 256
    $region49: #{tpu_custom_call.1} parent=1 // pred_fallthru
      _
    %2202 = vsyncpa [#allocation4], 1
    %2203 = vsyncpa [#allocation7], 1
    %2204 = vsyncpa [#allocation10], 1
    %2205 = vsyncpa [#allocation5], 1

</llo_original>
